<compile_context>
chip_gen: v5e
topology: v5e:2x2
jax: 0.10.0
libtpu: 0.0.40
codegen_flags: <defaults>
</compile_context>

<pallas_src>
import functools

import jax
import jax.numpy as jnp
from jax.experimental import pallas as pl
from jax.experimental.pallas import tpu as pltpu


def _focal_loss_kernel(x_ref, y_ref, w_ref, part_ref, *,
                       gamma: float, ignore_index: int,
                       n_rows: int, tile_rows: int):
    i = pl.program_id(0)

    x = x_ref[...].astype(jnp.float32)            # (TM, C)
    y = y_ref[...]                                 # (TM, 1) int32 labels
    w = w_ref[...]                                 # (TM, 1) f32 = alpha[y]

    # log_softmax pieces; the full (TM, C) log_p is never materialized.
    m = jnp.max(x, axis=-1, keepdims=True)         # (TM, 1)
    z = x - m
    lse = jnp.log(jnp.sum(jnp.exp(z), axis=-1, keepdims=True))      # (TM, 1)

    # one-hot gather of z[row, y]; log_pt = z_y - lse
    class_iota = jax.lax.broadcasted_iota(jnp.int32, x.shape, 1)    # (TM, C)
    onehot = class_iota == y
    z_y = jnp.sum(jnp.where(onehot, z, 0.0), axis=-1, keepdims=True)  # (TM, 1)
    log_pt = z_y - lse

    ce = -w * log_pt                               # NLLLoss(weight=alpha, 'none')

    if gamma == 0.0:
        loss = ce                                  # (1 - pt)**0 == 1
    else:
        pt = jnp.exp(log_pt)
        base = jnp.maximum(1.0 - pt, 0.0)          # clamp fp rounding (pt > 1)
        if float(gamma).is_integer() and 1.0 <= gamma <= 4.0:
            focal = base                           # repeated VPU multiplies
            for _ in range(int(gamma) - 1):
                focal = focal * base
        else:
            focal = jnp.power(base, jnp.float32(gamma))
        loss = focal * ce

    # mask ignored labels and rows past N (partial last tile reads garbage)
    row = jax.lax.broadcasted_iota(jnp.int32, y.shape, 0) + i * tile_rows
    valid = (y != ignore_index) & (row < n_rows)
    loss = jnp.where(valid, loss, 0.0)

    # lane-dense per-tile partial (wrapper reads [:, 0, 0]); unmasked stores and
    # no resident accumulator, so the grid axis stays "parallel".
    part_ref[...] = jnp.zeros(part_ref.shape, jnp.float32) + jnp.sum(loss)


def _tile_plan(n, c, itemsize, tile_rows=None):
    """Row-tile size + VMEM limit that are safe across v5e/v6e/v7x."""
    c_pad = ((max(c, 1) + 127) // 128) * 128       # lane padding inside VMEM
    # per-row VMEM: double-buffered x + y + w blocks (lane padded) plus ~6
    # lane-padded f32 elementwise intermediates (x_f32, z, exp(z), iota, ...).
    per_row = 2 * (c_pad * itemsize + 2 * 128 * 4) + 6 * c_pad * 4
    if tile_rows is None:
        budget = 24 * 1024 * 1024                  # fits v7x 64 MiB VMEM w/ headroom
        tr = max(budget // per_row, 32)
        tr = min(tr, 8192)
        if tr >= n:
            tr = n                                 # one full-array block
        else:
            tr = max((tr // 32) * 32, 32)          # sublane-pack friendly (f32/bf16/i8)
    else:
        tr = int(tile_rows)
    vmem_limit = int(min(max(tr * per_row + (4 << 20), 24 << 20), 48 << 20))
    return tr, vmem_limit


def focal_loss(x, y, alpha=None, *, gamma: float = 0.0, ignore_index: int = -100,
               reduction: str = "mean", tile_rows=None):
    """Pallas TPU FocalLoss forward.

    x: (N, C) or (N, C, d1..dK) float logits (f32 or bf16, streamed in native dtype)
    y: (N,)  or (N, d1..dK)     int class labels
    alpha: optional (C,) per-class weights (None == all ones)
    reduction: 'mean' or 'sum'
    """
    if reduction not in ("mean", "sum"):
        # TODO(synk): reduction='none' returns a dynamically-sized per-valid-row
        # tensor in PyTorch; no static-shape Pallas equivalent.
        raise ValueError("reduction must be 'mean' or 'sum'")

    if x.ndim > 2:
        c = x.shape[1]
        perm = (0,) + tuple(range(2, x.ndim)) + (1,)
        # TODO(synk): for very large spatial inputs this transpose is an extra HBM
        # pass; a 2-D grid over the original (N, C, d) layout would avoid it.
        x = jnp.transpose(x, perm).reshape(-1, c)
        y = y.reshape(-1)
    n, c = x.shape

    y = y.astype(jnp.int32)
    valid = y != ignore_index
    if alpha is None:
        w = jnp.ones((n,), jnp.float32)
    else:
        alpha_arr = jnp.asarray(alpha, dtype=jnp.float32).reshape(-1)
        y_safe = jnp.where(valid, y, 0)
        w = jnp.take(alpha_arr, y_safe, axis=0).astype(jnp.float32)
    cnt = jnp.sum(valid.astype(jnp.float32))

    itemsize = jnp.dtype(x.dtype).itemsize
    tr, vmem_limit = _tile_plan(n, c, itemsize, tile_rows)
    num_tiles = (n + tr - 1) // tr

    kernel = functools.partial(_focal_loss_kernel, gamma=float(gamma),
                               ignore_index=int(ignore_index),
                               n_rows=n, tile_rows=tr)

    partials = pl.pallas_call(
        kernel,
        out_shape=jax.ShapeDtypeStruct((num_tiles, 8, 128), jnp.float32),
        grid_spec=pltpu.PrefetchScalarGridSpec(
            num_scalar_prefetch=0,
            grid=(num_tiles,),
            in_specs=[
                pl.BlockSpec((tr, c), lambda i: (i, 0)),
                pl.BlockSpec((tr, 1), lambda i: (i, 0)),
                pl.BlockSpec((tr, 1), lambda i: (i, 0)),
            ],
            out_specs=pl.BlockSpec((1, 8, 128), lambda i: (i, 0, 0)),
        ),
        compiler_params=pltpu.CompilerParams(
            dimension_semantics=("parallel",),
            vmem_limit_bytes=vmem_limit),
    )(x, y.reshape(n, 1), w.reshape(n, 1))

    loss_sum = jnp.sum(partials[:, 0, 0])
    if reduction == "sum":
        return loss_sum
    # 'mean' (== torch: returns 0.0 if there are no unignored labels)
    return jnp.where(cnt > 0, loss_sum / jnp.maximum(cnt, 1.0), jnp.float32(0.0))


def _focal_loss_ref(x, y, alpha, gamma, ignore_index, reduction="mean"):
    """Pure-JAX reference mirroring the PyTorch module."""
    if x.ndim > 2:
        c = x.shape[1]
        perm = (0,) + tuple(range(2, x.ndim)) + (1,)
        x = jnp.transpose(x, perm).reshape(-1, c)
        y = y.reshape(-1)
    valid = y != ignore_index
    log_p = jax.nn.log_softmax(x.astype(jnp.float32), axis=-1)
    y_safe = jnp.where(valid, y, 0)
    log_pt = jnp.take_along_axis(log_p, y_safe[:, None], axis=-1)[:, 0]
    a = jnp.ones((x.shape[-1],), jnp.float32) if alpha is None else jnp.asarray(alpha, jnp.float32)
    ce = -a[y_safe] * log_pt
    loss = ((1.0 - jnp.exp(log_pt)) ** gamma) * ce
    loss = jnp.where(valid, loss, 0.0)
    if reduction == "sum":
        return jnp.sum(loss)
    cnt = jnp.sum(valid)
    return jnp.where(cnt > 0, jnp.sum(loss) / jnp.maximum(cnt, 1), 0.0)


if __name__ == "__main__":
    key = jax.random.PRNGKey(0)
    kx, ky, kx2, ky2 = jax.random.split(key, 4)

    IGNORE = -100

    # --- test 1: segmentation-style (N, C, d1, d2) input, per-class alpha, gamma=2
    B, C, H, W = 2, 4, 16, 16
    GAMMA = 2.0
    x = jax.random.normal(kx, (B, C, H, W), dtype=jnp.float32)
    y = jax.random.randint(ky, (B, H, W), 0, C, dtype=jnp.int32)
    y = y.at[0, 0, 0].set(IGNORE).at[1, 3, 7].set(IGNORE)   # exercise the mask
    alpha = 0.5 + jnp.arange(C, dtype=jnp.float32) / C

    out = jax.block_until_ready(
        focal_loss(x, y, alpha, gamma=GAMMA, ignore_index=IGNORE, reduction="mean"))
    ref = _focal_loss_ref(x, y, alpha, GAMMA, IGNORE, "mean")
    assert jnp.allclose(out, ref, rtol=1e-5, atol=1e-5), (out, ref)

    out_s = jax.block_until_ready(
        focal_loss(x, y, alpha, gamma=GAMMA, ignore_index=IGNORE, reduction="sum"))
    ref_s = _focal_loss_ref(x, y, alpha, GAMMA, IGNORE, "sum")
    assert jnp.allclose(out_s, ref_s, rtol=1e-5, atol=1e-4), (out_s, ref_s)

    # --- test 2: plain (N, C) input with N not a multiple of 8/32, alpha=None, gamma=0
    N2, C2 = 100, 8
    x2 = jax.random.normal(kx2, (N2, C2), dtype=jnp.float32)
    y2 = jax.random.randint(ky2, (N2,), 0, C2, dtype=jnp.int32)
    y2 = y2.at[0].set(IGNORE).at[17].set(IGNORE)
    out2 = jax.block_until_ready(
        focal_loss(x2, y2, None, gamma=0.0, ignore_index=IGNORE, reduction="mean"))
    ref2 = _focal_loss_ref(x2, y2, None, 0.0, IGNORE, "mean")
    assert jnp.allclose(out2, ref2, rtol=1e-5, atol=1e-5), (out2, ref2)

    # --- test 3: bf16 logits streamed without a wrapper f32 pre-cast
    xb = x.astype(jnp.bfloat16)
    out3 = jax.block_until_ready(
        focal_loss(xb, y, alpha, gamma=GAMMA, ignore_index=IGNORE, reduction="mean"))
    ref3 = _focal_loss_ref(xb, y, alpha, GAMMA, IGNORE, "mean")
    assert jnp.allclose(out3, ref3, rtol=1e-4, atol=1e-4), (out3, ref3)

    print("KERNEL_OK")
</pallas_src>

<mosaic_0001>
module attributes {stable_mosaic.version = 11 : i64} {
  func.func @_focal_loss_kernel(%arg0: i32, %arg1: memref<512x4xf32, #tpu.memory_space<vmem>>, %arg2: memref<512x1xi32, #tpu.memory_space<vmem>>, %arg3: memref<512x1xf32, #tpu.memory_space<vmem>>, %arg4: memref<1x8x128xf32, #tpu.memory_space<vmem>>) attributes {dimension_semantics = [#tpu.dimension_semantics<parallel>], iteration_bounds = array<i64: 1>, scalar_prefetch = 0 : i64, scratch_operands = 0 : i64, tpu.core_type = #tpu.core_type<tc>, window_params = [{transform_indices = @transform_0, window_bounds = array<i64: 512, 4>}, {transform_indices = @transform_1, window_bounds = array<i64: 512, 1>}, {transform_indices = @transform_2, window_bounds = array<i64: 512, 1>}, {transform_indices = @transform_3, window_bounds = array<i64: 1, 8, 128>}]} {
    %c0 = arith.constant 0 : index
    %c0_0 = arith.constant 0 : index
    %0 = vector.load %arg1[%c0, %c0_0] : memref<512x4xf32, #tpu.memory_space<vmem>>, vector<512x4xf32>
    %c0_1 = arith.constant 0 : index
    %c0_2 = arith.constant 0 : index
    %1 = vector.load %arg2[%c0_1, %c0_2] : memref<512x1xi32, #tpu.memory_space<vmem>>, vector<512x1xi32>
    %c0_3 = arith.constant 0 : index
    %c0_4 = arith.constant 0 : index
    %2 = vector.load %arg3[%c0_3, %c0_4] : memref<512x1xf32, #tpu.memory_space<vmem>>, vector<512x1xf32>
    %cst = arith.constant dense<0xFF800000> : vector<512xf32>
    %3 = vector.multi_reduction <maximumf>, %0, %cst [1] : vector<512x4xf32> to vector<512xf32>
    %4 = vector.shape_cast %3 : vector<512xf32> to vector<512x1xf32>
    %5 = vector.broadcast %4 : vector<512x1xf32> to vector<512x4xf32>
    %6 = arith.subf %0, %5 : vector<512x4xf32>
    %7 = math.exp %6 : vector<512x4xf32>
    %cst_5 = arith.constant dense<0.000000e+00> : vector<512xf32>
    %8 = vector.multi_reduction <add>, %7, %cst_5 [1] : vector<512x4xf32> to vector<512xf32>
    %9 = vector.shape_cast %8 : vector<512xf32> to vector<512x1xf32>
    %10 = math.log %9 : vector<512x1xf32>
    %11 = tpu.iota {dimensions = array<i32: 1>} : vector<512x4xi32>
    %12 = vector.broadcast %1 : vector<512x1xi32> to vector<512x4xi32>
    %13 = arith.cmpi eq, %11, %12 : vector<512x4xi32>
    %cst_6 = arith.constant 0.000000e+00 : f32
    %14 = vector.broadcast %cst_6 : f32 to vector<512x4xf32>
    %15 = arith.select %13, %6, %14 : vector<512x4xi1>, vector<512x4xf32>
    %cst_7 = arith.constant dense<0.000000e+00> : vector<512xf32>
    %16 = vector.multi_reduction <add>, %15, %cst_7 [1] : vector<512x4xf32> to vector<512xf32>
    %17 = vector.shape_cast %16 : vector<512xf32> to vector<512x1xf32>
    %18 = arith.subf %17, %10 : vector<512x1xf32>
    %cst_8 = arith.constant 0.000000e+00 : f32
    %19 = vector.broadcast %cst_8 : f32 to vector<512x1xf32>
    %20 = arith.subf %19, %2 : vector<512x1xf32>
    %21 = arith.mulf %20, %18 : vector<512x1xf32>
    %22 = math.exp %18 : vector<512x1xf32>
    %cst_9 = arith.constant 1.000000e+00 : f32
    %23 = vector.broadcast %cst_9 : f32 to vector<512x1xf32>
    %24 = arith.subf %23, %22 : vector<512x1xf32>
    %cst_10 = arith.constant 0.000000e+00 : f32
    %25 = vector.broadcast %cst_10 : f32 to vector<512x1xf32>
    %26 = arith.maximumf %24, %25 : vector<512x1xf32>
    %27 = arith.mulf %26, %26 : vector<512x1xf32>
    %28 = arith.mulf %27, %21 : vector<512x1xf32>
    %29 = tpu.iota {dimensions = array<i32: 0>} : vector<512x1xi32>
    %c512_i32 = arith.constant 512 : i32
    %30 = arith.muli %arg0, %c512_i32 : i32
    %31 = vector.broadcast %30 : i32 to vector<512x1xi32>
    %32 = arith.addi %29, %31 : vector<512x1xi32>
    %c-100_i32 = arith.constant -100 : i32
    %33 = vector.broadcast %c-100_i32 : i32 to vector<512x1xi32>
    %34 = arith.cmpi ne, %1, %33 : vector<512x1xi32>
    %c512_i32_11 = arith.constant 512 : i32
    %35 = vector.broadcast %c512_i32_11 : i32 to vector<512x1xi32>
    %36 = arith.cmpi slt, %32, %35 : vector<512x1xi32>
    %37 = arith.andi %34, %36 : vector<512x1xi1>
    %cst_12 = arith.constant 0.000000e+00 : f32
    %38 = vector.broadcast %cst_12 : f32 to vector<512x1xf32>
    %39 = arith.select %37, %28, %38 : vector<512x1xi1>, vector<512x1xf32>
    %cst_13 = arith.constant 0.000000e+00 : f32
    %40 = vector.broadcast %cst_13 : f32 to vector<1x8x128xf32>
    %41 = vector.shape_cast %39 : vector<512x1xf32> to vector<1x512x1xf32>
    %cst_14 = arith.constant dense<0.000000e+00> : vector<1xf32>
    %42 = vector.multi_reduction <add>, %41, %cst_14 [1, 2] : vector<1x512x1xf32> to vector<1xf32>
    %43 = vector.shape_cast %42 : vector<1xf32> to vector<1x1x1xf32>
    %44 = vector.extract %43[0, 0, 0] : f32 from vector<1x1x1xf32>
    %45 = vector.broadcast %44 : f32 to vector<1x8x128xf32>
    %46 = arith.addf %40, %45 : vector<1x8x128xf32>
    %c0_15 = arith.constant 0 : index
    %c0_16 = arith.constant 0 : index
    %c0_17 = arith.constant 0 : index
    %47 = vector.load %arg4[%c0_15, %c0_16, %c0_17] : memref<1x8x128xf32, #tpu.memory_space<vmem>>, vector<1x8x128xf32>
    tpu.vector_store %arg4[%c0_15, %c0_16, %c0_17], %46 {strides = array<i32>} : memref<1x8x128xf32, #tpu.memory_space<vmem>>, vector<1x8x128xf32>,
    return
  }
  func.func @transform_0(%arg0: i32) -> (i32, i32) {
    %c0_i32 = arith.constant 0 : i32
    %c0_i32_0 = arith.constant 0 : i32
    return %arg0, %c0_i32 : i32, i32
  }
  func.func @transform_1(%arg0: i32) -> (i32, i32) {
    %c0_i32 = arith.constant 0 : i32
    %c0_i32_0 = arith.constant 0 : i32
    return %arg0, %c0_i32 : i32, i32
  }
  func.func @transform_2(%arg0: i32) -> (i32, i32) {
    %c0_i32 = arith.constant 0 : i32
    %c0_i32_0 = arith.constant 0 : i32
    return %arg0, %c0_i32 : i32, i32
  }
  func.func @transform_3(%arg0: i32) -> (i32, i32, i32) {
    %c0_i32 = arith.constant 0 : i32
    %c0_i32_0 = arith.constant 0 : i32
    %c0_i32_1 = arith.constant 0 : i32
    return %arg0, %c0_i32, %c0_i32_0 : i32, i32, i32
  }
}

</mosaic_0001>

<llo_original>
// kernel: tpu_custom_call.1
$region0: #{tpu_custom_call.1}
  #allocation0 [shape = 'u32[]', space=smem, size = 0x4, offset = 0x4, fixed_abs, tag = 'smem constant byte address 0x4 - core index']
  #allocation1 [shape = 'u32[72,128]{1,0:T(1,128)}', space=vmem, size = 0x9000, scoped, tag = 'internal scratch']
  %s0 = inlined_call_operand.vmem [shape: f32[512,4], index: 0, kind: input, shape index: {}]
  %s1 = inlined_call_operand.vmem [shape: s32[512,1], index: 1, kind: input, shape index: {}]
  %s2 = inlined_call_operand.vmem [shape: f32[512,1], index: 2, kind: input, shape index: {}]
  %s3 = inlined_call_operand.hbm [shape: f32[1,8,128], index: 3, kind: output, shape index: {}]
  %s4 = sld [smem:[#allocation0]]
  $region22: #{tpu_custom_call.1} parent=0
    _
  %s6 = ssub.s32 1, %s4
  %s7 = scalar_select 0, %s6, %s4
  $region1: #{tpu_custom_call.1} parent=0
    #allocation2 [shape = 'u8[4096]{0}', space=vmem, size = 0x1000, scoped, tag = 'output window, operand 0, single buffered']
    #allocation3 [shape = 's32[1]{0}', space=sflag, size = 0x4, scoped, tag = 'scoped memory for tpu_custom_call.1']
    %8 = vsyncpa [#allocation3], 0
    // Predicated region
    $region2: #{tpu_custom_call.1} parent=1 // pred_check
      _
    $region3: #{tpu_custom_call.1} parent=1 // pred_check_branch
      %10 = sbr.rel (0) target = $region5
    $region4: #{tpu_custom_call.1} parent=1 // pred_region
      _
    $region5: #{tpu_custom_call.1} parent=1 // pred_fallthru
      _
    // Predicated region
    $region6: #{tpu_custom_call.1} parent=1 // pred_check
      _
    $region7: #{tpu_custom_call.1} parent=1 // pred_check_branch
      %12 = sbr.rel (0) target = $region9
    $region8: #{tpu_custom_call.1} parent=1 // pred_region
      _
    $region9: #{tpu_custom_call.1} parent=1 // pred_fallthru
      _
    // Predicated region
    $region10: #{tpu_custom_call.1} parent=1 // pred_check
      _
    $region11: #{tpu_custom_call.1} parent=1 // pred_check_branch
      %14 = sbr.rel (0) target = $region13
    $region12: #{tpu_custom_call.1} parent=1 // pred_region
      _
    $region13: #{tpu_custom_call.1} parent=1 // pred_fallthru
      _
    %v15 = vld [vmem:[%s0] sm:$0xff]
    %v16 = vld [vmem:[%s0 + $0x8] sm:$0xff]
    %v17 = vld [vmem:[%s0 + $0x10] sm:$0xff]
    %v18 = vld [vmem:[%s0 + $0x18] sm:$0xff]
    %v19 = vld [vmem:[%s0 + $0x20] sm:$0xff]
    %v20 = vld [vmem:[%s0 + $0x28] sm:$0xff]
    %v21 = vld [vmem:[%s0 + $0x30] sm:$0xff]
    %v22 = vld [vmem:[%s0 + $0x38] sm:$0xff]
    %v23 = vld [vmem:[%s0 + $0x40] sm:$0xff]
    %v24 = vld [vmem:[%s0 + $0x48] sm:$0xff]
    %v25 = vld [vmem:[%s0 + $0x50] sm:$0xff]
    %v26 = vld [vmem:[%s0 + $0x58] sm:$0xff]
    %v27 = vld [vmem:[%s0 + $0x60] sm:$0xff]
    %v28 = vld [vmem:[%s0 + $0x68] sm:$0xff]
    %v29 = vld [vmem:[%s0 + $0x70] sm:$0xff]
    %v30 = vld [vmem:[%s0 + $0x78] sm:$0xff]
    %v31 = vld [vmem:[%s0 + $0x80] sm:$0xff]
    %v32 = vld [vmem:[%s0 + $0x88] sm:$0xff]
    %v33 = vld [vmem:[%s0 + $0x90] sm:$0xff]
    %v34 = vld [vmem:[%s0 + $0x98] sm:$0xff]
    %v35 = vld [vmem:[%s0 + $0xa0] sm:$0xff]
    %v36 = vld [vmem:[%s0 + $0xa8] sm:$0xff]
    %v37 = vld [vmem:[%s0 + $0xb0] sm:$0xff]
    %v38 = vld [vmem:[%s0 + $0xb8] sm:$0xff]
    %v39 = vld [vmem:[%s0 + $0xc0] sm:$0xff]
    %v40 = vld [vmem:[%s0 + $0xc8] sm:$0xff]
    %v41 = vld [vmem:[%s0 + $0xd0] sm:$0xff]
    %v42 = vld [vmem:[%s0 + $0xd8] sm:$0xff]
    %v43 = vld [vmem:[%s0 + $0xe0] sm:$0xff]
    %v44 = vld [vmem:[%s0 + $0xe8] sm:$0xff]
    %v45 = vld [vmem:[%s0 + $0xf0] sm:$0xff]
    %v46 = vld [vmem:[%s0 + $0xf8] sm:$0xff]
    %v47 = vld [vmem:[%s0 + $0x100] sm:$0xff]
    %v48 = vld [vmem:[%s0 + $0x108] sm:$0xff]
    %v49 = vld [vmem:[%s0 + $0x110] sm:$0xff]
    %v50 = vld [vmem:[%s0 + $0x118] sm:$0xff]
    %v51 = vld [vmem:[%s0 + $0x120] sm:$0xff]
    %v52 = vld [vmem:[%s0 + $0x128] sm:$0xff]
    %v53 = vld [vmem:[%s0 + $0x130] sm:$0xff]
    %v54 = vld [vmem:[%s0 + $0x138] sm:$0xff]
    %v55 = vld [vmem:[%s0 + $0x140] sm:$0xff]
    %v56 = vld [vmem:[%s0 + $0x148] sm:$0xff]
    %v57 = vld [vmem:[%s0 + $0x150] sm:$0xff]
    %v58 = vld [vmem:[%s0 + $0x158] sm:$0xff]
    %v59 = vld [vmem:[%s0 + $0x160] sm:$0xff]
    %v60 = vld [vmem:[%s0 + $0x168] sm:$0xff]
    %v61 = vld [vmem:[%s0 + $0x170] sm:$0xff]
    %v62 = vld [vmem:[%s0 + $0x178] sm:$0xff]
    %v63 = vld [vmem:[%s0 + $0x180] sm:$0xff]
    %v64 = vld [vmem:[%s0 + $0x188] sm:$0xff]
    %v65 = vld [vmem:[%s0 + $0x190] sm:$0xff]
    %v66 = vld [vmem:[%s0 + $0x198] sm:$0xff]
    %v67 = vld [vmem:[%s0 + $0x1a0] sm:$0xff]
    %v68 = vld [vmem:[%s0 + $0x1a8] sm:$0xff]
    %v69 = vld [vmem:[%s0 + $0x1b0] sm:$0xff]
    %v70 = vld [vmem:[%s0 + $0x1b8] sm:$0xff]
    %v71 = vld [vmem:[%s0 + $0x1c0] sm:$0xff]
    %v72 = vld [vmem:[%s0 + $0x1c8] sm:$0xff]
    %v73 = vld [vmem:[%s0 + $0x1d0] sm:$0xff]
    %v74 = vld [vmem:[%s0 + $0x1d8] sm:$0xff]
    %v75 = vld [vmem:[%s0 + $0x1e0] sm:$0xff]
    %v76 = vld [vmem:[%s0 + $0x1e8] sm:$0xff]
    %v77 = vld [vmem:[%s0 + $0x1f0] sm:$0xff]
    %v78 = vld [vmem:[%s0 + $0x1f8] sm:$0xff]
    %v79 = vld [vmem:[%s1] sm:$0xff]
    %v80 = vld [vmem:[%s1 + $0x8] sm:$0xff]
    %v81 = vld [vmem:[%s1 + $0x10] sm:$0xff]
    %v82 = vld [vmem:[%s1 + $0x18] sm:$0xff]
    %v83 = vld [vmem:[%s1 + $0x20] sm:$0xff]
    %v84 = vld [vmem:[%s1 + $0x28] sm:$0xff]
    %v85 = vld [vmem:[%s1 + $0x30] sm:$0xff]
    %v86 = vld [vmem:[%s1 + $0x38] sm:$0xff]
    %v87 = vld [vmem:[%s1 + $0x40] sm:$0xff]
    %v88 = vld [vmem:[%s1 + $0x48] sm:$0xff]
    %v89 = vld [vmem:[%s1 + $0x50] sm:$0xff]
    %v90 = vld [vmem:[%s1 + $0x58] sm:$0xff]
    %v91 = vld [vmem:[%s1 + $0x60] sm:$0xff]
    %v92 = vld [vmem:[%s1 + $0x68] sm:$0xff]
    %v93 = vld [vmem:[%s1 + $0x70] sm:$0xff]
    %v94 = vld [vmem:[%s1 + $0x78] sm:$0xff]
    %v95 = vld [vmem:[%s1 + $0x80] sm:$0xff]
    %v96 = vld [vmem:[%s1 + $0x88] sm:$0xff]
    %v97 = vld [vmem:[%s1 + $0x90] sm:$0xff]
    %v98 = vld [vmem:[%s1 + $0x98] sm:$0xff]
    %v99 = vld [vmem:[%s1 + $0xa0] sm:$0xff]
    %v100 = vld [vmem:[%s1 + $0xa8] sm:$0xff]
    %v101 = vld [vmem:[%s1 + $0xb0] sm:$0xff]
    %v102 = vld [vmem:[%s1 + $0xb8] sm:$0xff]
    %v103 = vld [vmem:[%s1 + $0xc0] sm:$0xff]
    %v104 = vld [vmem:[%s1 + $0xc8] sm:$0xff]
    %v105 = vld [vmem:[%s1 + $0xd0] sm:$0xff]
    %v106 = vld [vmem:[%s1 + $0xd8] sm:$0xff]
    %v107 = vld [vmem:[%s1 + $0xe0] sm:$0xff]
    %v108 = vld [vmem:[%s1 + $0xe8] sm:$0xff]
    %v109 = vld [vmem:[%s1 + $0xf0] sm:$0xff]
    %v110 = vld [vmem:[%s1 + $0xf8] sm:$0xff]
    %v111 = vld [vmem:[%s1 + $0x100] sm:$0xff]
    %v112 = vld [vmem:[%s1 + $0x108] sm:$0xff]
    %v113 = vld [vmem:[%s1 + $0x110] sm:$0xff]
    %v114 = vld [vmem:[%s1 + $0x118] sm:$0xff]
    %v115 = vld [vmem:[%s1 + $0x120] sm:$0xff]
    %v116 = vld [vmem:[%s1 + $0x128] sm:$0xff]
    %v117 = vld [vmem:[%s1 + $0x130] sm:$0xff]
    %v118 = vld [vmem:[%s1 + $0x138] sm:$0xff]
    %v119 = vld [vmem:[%s1 + $0x140] sm:$0xff]
    %v120 = vld [vmem:[%s1 + $0x148] sm:$0xff]
    %v121 = vld [vmem:[%s1 + $0x150] sm:$0xff]
    %v122 = vld [vmem:[%s1 + $0x158] sm:$0xff]
    %v123 = vld [vmem:[%s1 + $0x160] sm:$0xff]
    %v124 = vld [vmem:[%s1 + $0x168] sm:$0xff]
    %v125 = vld [vmem:[%s1 + $0x170] sm:$0xff]
    %v126 = vld [vmem:[%s1 + $0x178] sm:$0xff]
    %v127 = vld [vmem:[%s1 + $0x180] sm:$0xff]
    %v128 = vld [vmem:[%s1 + $0x188] sm:$0xff]
    %v129 = vld [vmem:[%s1 + $0x190] sm:$0xff]
    %v130 = vld [vmem:[%s1 + $0x198] sm:$0xff]
    %v131 = vld [vmem:[%s1 + $0x1a0] sm:$0xff]
    %v132 = vld [vmem:[%s1 + $0x1a8] sm:$0xff]
    %v133 = vld [vmem:[%s1 + $0x1b0] sm:$0xff]
    %v134 = vld [vmem:[%s1 + $0x1b8] sm:$0xff]
    %v135 = vld [vmem:[%s1 + $0x1c0] sm:$0xff]
    %v136 = vld [vmem:[%s1 + $0x1c8] sm:$0xff]
    %v137 = vld [vmem:[%s1 + $0x1d0] sm:$0xff]
    %v138 = vld [vmem:[%s1 + $0x1d8] sm:$0xff]
    %v139 = vld [vmem:[%s1 + $0x1e0] sm:$0xff]
    %v140 = vld [vmem:[%s1 + $0x1e8] sm:$0xff]
    %v141 = vld [vmem:[%s1 + $0x1f0] sm:$0xff]
    %v142 = vld [vmem:[%s1 + $0x1f8] sm:$0xff]
    %v143 = vld [vmem:[%s2] sm:$0xff]
    %v144 = vld [vmem:[%s2 + $0x8] sm:$0xff]
    %v145 = vld [vmem:[%s2 + $0x10] sm:$0xff]
    %v146 = vld [vmem:[%s2 + $0x18] sm:$0xff]
    %v147 = vld [vmem:[%s2 + $0x20] sm:$0xff]
    %v148 = vld [vmem:[%s2 + $0x28] sm:$0xff]
    %v149 = vld [vmem:[%s2 + $0x30] sm:$0xff]
    %v150 = vld [vmem:[%s2 + $0x38] sm:$0xff]
    %v151 = vld [vmem:[%s2 + $0x40] sm:$0xff]
    %v152 = vld [vmem:[%s2 + $0x48] sm:$0xff]
    %v153 = vld [vmem:[%s2 + $0x50] sm:$0xff]
    %v154 = vld [vmem:[%s2 + $0x58] sm:$0xff]
    %v155 = vld [vmem:[%s2 + $0x60] sm:$0xff]
    %v156 = vld [vmem:[%s2 + $0x68] sm:$0xff]
    %v157 = vld [vmem:[%s2 + $0x70] sm:$0xff]
    %v158 = vld [vmem:[%s2 + $0x78] sm:$0xff]
    %v159 = vld [vmem:[%s2 + $0x80] sm:$0xff]
    %v160 = vld [vmem:[%s2 + $0x88] sm:$0xff]
    %v161 = vld [vmem:[%s2 + $0x90] sm:$0xff]
    %v162 = vld [vmem:[%s2 + $0x98] sm:$0xff]
    %v163 = vld [vmem:[%s2 + $0xa0] sm:$0xff]
    %v164 = vld [vmem:[%s2 + $0xa8] sm:$0xff]
    %v165 = vld [vmem:[%s2 + $0xb0] sm:$0xff]
    %v166 = vld [vmem:[%s2 + $0xb8] sm:$0xff]
    %v167 = vld [vmem:[%s2 + $0xc0] sm:$0xff]
    %v168 = vld [vmem:[%s2 + $0xc8] sm:$0xff]
    %v169 = vld [vmem:[%s2 + $0xd0] sm:$0xff]
    %v170 = vld [vmem:[%s2 + $0xd8] sm:$0xff]
    %v171 = vld [vmem:[%s2 + $0xe0] sm:$0xff]
    %v172 = vld [vmem:[%s2 + $0xe8] sm:$0xff]
    %v173 = vld [vmem:[%s2 + $0xf0] sm:$0xff]
    %v174 = vld [vmem:[%s2 + $0xf8] sm:$0xff]
    %v175 = vld [vmem:[%s2 + $0x100] sm:$0xff]
    %v176 = vld [vmem:[%s2 + $0x108] sm:$0xff]
    %v177 = vld [vmem:[%s2 + $0x110] sm:$0xff]
    %v178 = vld [vmem:[%s2 + $0x118] sm:$0xff]
    %v179 = vld [vmem:[%s2 + $0x120] sm:$0xff]
    %v180 = vld [vmem:[%s2 + $0x128] sm:$0xff]
    %v181 = vld [vmem:[%s2 + $0x130] sm:$0xff]
    %v182 = vld [vmem:[%s2 + $0x138] sm:$0xff]
    %v183 = vld [vmem:[%s2 + $0x140] sm:$0xff]
    %v184 = vld [vmem:[%s2 + $0x148] sm:$0xff]
    %v185 = vld [vmem:[%s2 + $0x150] sm:$0xff]
    %v186 = vld [vmem:[%s2 + $0x158] sm:$0xff]
    %v187 = vld [vmem:[%s2 + $0x160] sm:$0xff]
    %v188 = vld [vmem:[%s2 + $0x168] sm:$0xff]
    %v189 = vld [vmem:[%s2 + $0x170] sm:$0xff]
    %v190 = vld [vmem:[%s2 + $0x178] sm:$0xff]
    %v191 = vld [vmem:[%s2 + $0x180] sm:$0xff]
    %v192 = vld [vmem:[%s2 + $0x188] sm:$0xff]
    %v193 = vld [vmem:[%s2 + $0x190] sm:$0xff]
    %v194 = vld [vmem:[%s2 + $0x198] sm:$0xff]
    %v195 = vld [vmem:[%s2 + $0x1a0] sm:$0xff]
    %v196 = vld [vmem:[%s2 + $0x1a8] sm:$0xff]
    %v197 = vld [vmem:[%s2 + $0x1b0] sm:$0xff]
    %v198 = vld [vmem:[%s2 + $0x1b8] sm:$0xff]
    %v199 = vld [vmem:[%s2 + $0x1c0] sm:$0xff]
    %v200 = vld [vmem:[%s2 + $0x1c8] sm:$0xff]
    %v201 = vld [vmem:[%s2 + $0x1d0] sm:$0xff]
    %v202 = vld [vmem:[%s2 + $0x1d8] sm:$0xff]
    %v203 = vld [vmem:[%s2 + $0x1e0] sm:$0xff]
    %v204 = vld [vmem:[%s2 + $0x1e8] sm:$0xff]
    %v205 = vld [vmem:[%s2 + $0x1f0] sm:$0xff]
    %v206 = vld [vmem:[%s2 + $0x1f8] sm:$0xff]
    %vm207 = vcmask 31744
    %v208 = vsel %vm207, %v15, -inf
    %209 = vmax.xlane.f32.xlu0 %v208
    %v210 = vpop.xlane.xlu0 %209
    %v211 = vsel %vm207, %v16, -inf
    %212 = vmax.xlane.f32.xlu0 %v211
    %v213 = vpop.xlane.xlu0 %212
    %v214 = vsel %vm207, %v17, -inf
    %215 = vmax.xlane.f32.xlu0 %v214
    %v216 = vpop.xlane.xlu0 %215
    %v217 = vsel %vm207, %v18, -inf
    %218 = vmax.xlane.f32.xlu0 %v217
    %v219 = vpop.xlane.xlu0 %218
    %v220 = vsel %vm207, %v19, -inf
    %221 = vmax.xlane.f32.xlu0 %v220
    %v222 = vpop.xlane.xlu0 %221
    %v223 = vsel %vm207, %v20, -inf
    %224 = vmax.xlane.f32.xlu0 %v223
    %v225 = vpop.xlane.xlu0 %224
    %v226 = vsel %vm207, %v21, -inf
    %227 = vmax.xlane.f32.xlu0 %v226
    %v228 = vpop.xlane.xlu0 %227
    %v229 = vsel %vm207, %v22, -inf
    %230 = vmax.xlane.f32.xlu0 %v229
    %v231 = vpop.xlane.xlu0 %230
    %v232 = vsel %vm207, %v23, -inf
    %233 = vmax.xlane.f32.xlu0 %v232
    %v234 = vpop.xlane.xlu0 %233
    %v235 = vsel %vm207, %v24, -inf
    %236 = vmax.xlane.f32.xlu0 %v235
    %v237 = vpop.xlane.xlu0 %236
    %v238 = vsel %vm207, %v25, -inf
    %239 = vmax.xlane.f32.xlu0 %v238
    %v240 = vpop.xlane.xlu0 %239
    %v241 = vsel %vm207, %v26, -inf
    %242 = vmax.xlane.f32.xlu0 %v241
    %v243 = vpop.xlane.xlu0 %242
    %v244 = vsel %vm207, %v27, -inf
    %245 = vmax.xlane.f32.xlu0 %v244
    %v246 = vpop.xlane.xlu0 %245
    %v247 = vsel %vm207, %v28, -inf
    %248 = vmax.xlane.f32.xlu0 %v247
    %v249 = vpop.xlane.xlu0 %248
    %v250 = vsel %vm207, %v29, -inf
    %251 = vmax.xlane.f32.xlu0 %v250
    %v252 = vpop.xlane.xlu0 %251
    %v253 = vsel %vm207, %v30, -inf
    %254 = vmax.xlane.f32.xlu0 %v253
    %v255 = vpop.xlane.xlu0 %254
    %v256 = vsel %vm207, %v31, -inf
    %257 = vmax.xlane.f32.xlu0 %v256
    %v258 = vpop.xlane.xlu0 %257
    %v259 = vsel %vm207, %v32, -inf
    %260 = vmax.xlane.f32.xlu0 %v259
    %v261 = vpop.xlane.xlu0 %260
    %v262 = vsel %vm207, %v33, -inf
    %263 = vmax.xlane.f32.xlu0 %v262
    %v264 = vpop.xlane.xlu0 %263
    %v265 = vsel %vm207, %v34, -inf
    %266 = vmax.xlane.f32.xlu0 %v265
    %v267 = vpop.xlane.xlu0 %266
    %v268 = vsel %vm207, %v35, -inf
    %269 = vmax.xlane.f32.xlu0 %v268
    %v270 = vpop.xlane.xlu0 %269
    %v271 = vsel %vm207, %v36, -inf
    %272 = vmax.xlane.f32.xlu0 %v271
    %v273 = vpop.xlane.xlu0 %272
    %v274 = vsel %vm207, %v37, -inf
    %275 = vmax.xlane.f32.xlu0 %v274
    %v276 = vpop.xlane.xlu0 %275
    %v277 = vsel %vm207, %v38, -inf
    %278 = vmax.xlane.f32.xlu0 %v277
    %v279 = vpop.xlane.xlu0 %278
    %v280 = vsel %vm207, %v39, -inf
    %281 = vmax.xlane.f32.xlu0 %v280
    %v282 = vpop.xlane.xlu0 %281
    %v283 = vsel %vm207, %v40, -inf
    %284 = vmax.xlane.f32.xlu0 %v283
    %v285 = vpop.xlane.xlu0 %284
    %v286 = vsel %vm207, %v41, -inf
    %287 = vmax.xlane.f32.xlu0 %v286
    %v288 = vpop.xlane.xlu0 %287
    %v289 = vsel %vm207, %v42, -inf
    %290 = vmax.xlane.f32.xlu0 %v289
    %v291 = vpop.xlane.xlu0 %290
    %v292 = vsel %vm207, %v43, -inf
    %293 = vmax.xlane.f32.xlu0 %v292
    %v294 = vpop.xlane.xlu0 %293
    %v295 = vsel %vm207, %v44, -inf
    %296 = vmax.xlane.f32.xlu0 %v295
    %v297 = vpop.xlane.xlu0 %296
    %v298 = vsel %vm207, %v45, -inf
    %299 = vmax.xlane.f32.xlu0 %v298
    %v300 = vpop.xlane.xlu0 %299
    %v301 = vsel %vm207, %v46, -inf
    %302 = vmax.xlane.f32.xlu0 %v301
    %v303 = vpop.xlane.xlu0 %302
    %v304 = vsel %vm207, %v47, -inf
    %305 = vmax.xlane.f32.xlu0 %v304
    %v306 = vpop.xlane.xlu0 %305
    %v307 = vsel %vm207, %v48, -inf
    %308 = vmax.xlane.f32.xlu0 %v307
    %v309 = vpop.xlane.xlu0 %308
    %v310 = vsel %vm207, %v49, -inf
    %311 = vmax.xlane.f32.xlu0 %v310
    %v312 = vpop.xlane.xlu0 %311
    %v313 = vsel %vm207, %v50, -inf
    %314 = vmax.xlane.f32.xlu0 %v313
    %v315 = vpop.xlane.xlu0 %314
    %v316 = vsel %vm207, %v51, -inf
    %317 = vmax.xlane.f32.xlu0 %v316
    %v318 = vpop.xlane.xlu0 %317
    %v319 = vsel %vm207, %v52, -inf
    %320 = vmax.xlane.f32.xlu0 %v319
    %v321 = vpop.xlane.xlu0 %320
    %v322 = vsel %vm207, %v53, -inf
    %323 = vmax.xlane.f32.xlu0 %v322
    %v324 = vpop.xlane.xlu0 %323
    %v325 = vsel %vm207, %v54, -inf
    %326 = vmax.xlane.f32.xlu0 %v325
    %v327 = vpop.xlane.xlu0 %326
    %v328 = vsel %vm207, %v55, -inf
    %329 = vmax.xlane.f32.xlu0 %v328
    %v330 = vpop.xlane.xlu0 %329
    %v331 = vsel %vm207, %v56, -inf
    %332 = vmax.xlane.f32.xlu0 %v331
    %v333 = vpop.xlane.xlu0 %332
    %v334 = vsel %vm207, %v57, -inf
    %335 = vmax.xlane.f32.xlu0 %v334
    %v336 = vpop.xlane.xlu0 %335
    %v337 = vsel %vm207, %v58, -inf
    %338 = vmax.xlane.f32.xlu0 %v337
    %v339 = vpop.xlane.xlu0 %338
    %v340 = vsel %vm207, %v59, -inf
    %341 = vmax.xlane.f32.xlu0 %v340
    %v342 = vpop.xlane.xlu0 %341
    %v343 = vsel %vm207, %v60, -inf
    %344 = vmax.xlane.f32.xlu0 %v343
    %v345 = vpop.xlane.xlu0 %344
    %v346 = vsel %vm207, %v61, -inf
    %347 = vmax.xlane.f32.xlu0 %v346
    %v348 = vpop.xlane.xlu0 %347
    %v349 = vsel %vm207, %v62, -inf
    %350 = vmax.xlane.f32.xlu0 %v349
    %v351 = vpop.xlane.xlu0 %350
    %v352 = vsel %vm207, %v63, -inf
    %353 = vmax.xlane.f32.xlu0 %v352
    %v354 = vpop.xlane.xlu0 %353
    %v355 = vsel %vm207, %v64, -inf
    %356 = vmax.xlane.f32.xlu0 %v355
    %v357 = vpop.xlane.xlu0 %356
    %v358 = vsel %vm207, %v65, -inf
    %359 = vmax.xlane.f32.xlu0 %v358
    %v360 = vpop.xlane.xlu0 %359
    %v361 = vsel %vm207, %v66, -inf
    %362 = vmax.xlane.f32.xlu0 %v361
    %v363 = vpop.xlane.xlu0 %362
    %v364 = vsel %vm207, %v67, -inf
    %365 = vmax.xlane.f32.xlu0 %v364
    %v366 = vpop.xlane.xlu0 %365
    %v367 = vsel %vm207, %v68, -inf
    %368 = vmax.xlane.f32.xlu0 %v367
    %v369 = vpop.xlane.xlu0 %368
    %v370 = vsel %vm207, %v69, -inf
    %371 = vmax.xlane.f32.xlu0 %v370
    %v372 = vpop.xlane.xlu0 %371
    %v373 = vsel %vm207, %v70, -inf
    %374 = vmax.xlane.f32.xlu0 %v373
    %v375 = vpop.xlane.xlu0 %374
    %v376 = vsel %vm207, %v71, -inf
    %377 = vmax.xlane.f32.xlu0 %v376
    %v378 = vpop.xlane.xlu0 %377
    %v379 = vsel %vm207, %v72, -inf
    %380 = vmax.xlane.f32.xlu0 %v379
    %v381 = vpop.xlane.xlu0 %380
    %v382 = vsel %vm207, %v73, -inf
    %383 = vmax.xlane.f32.xlu0 %v382
    %v384 = vpop.xlane.xlu0 %383
    %v385 = vsel %vm207, %v74, -inf
    %386 = vmax.xlane.f32.xlu0 %v385
    %v387 = vpop.xlane.xlu0 %386
    %v388 = vsel %vm207, %v75, -inf
    %389 = vmax.xlane.f32.xlu0 %v388
    %v390 = vpop.xlane.xlu0 %389
    %v391 = vsel %vm207, %v76, -inf
    %392 = vmax.xlane.f32.xlu0 %v391
    %v393 = vpop.xlane.xlu0 %392
    %v394 = vsel %vm207, %v77, -inf
    %395 = vmax.xlane.f32.xlu0 %v394
    %v396 = vpop.xlane.xlu0 %395
    %v397 = vsel %vm207, %v78, -inf
    %398 = vmax.xlane.f32.xlu0 %v397
    %v399 = vpop.xlane.xlu0 %398
    %v400 = vsub.f32 %v15, %v210
    %v401 = vsub.f32 %v16, %v213
    %v402 = vsub.f32 %v17, %v216
    %v403 = vsub.f32 %v18, %v219
    %v404 = vsub.f32 %v19, %v222
    %v405 = vsub.f32 %v20, %v225
    %v406 = vsub.f32 %v21, %v228
    %v407 = vsub.f32 %v22, %v231
    %v408 = vsub.f32 %v23, %v234
    %v409 = vsub.f32 %v24, %v237
    %v410 = vsub.f32 %v25, %v240
    %v411 = vsub.f32 %v26, %v243
    %v412 = vsub.f32 %v27, %v246
    %v413 = vsub.f32 %v28, %v249
    %v414 = vsub.f32 %v29, %v252
    %v415 = vsub.f32 %v30, %v255
    %v416 = vsub.f32 %v31, %v258
    %v417 = vsub.f32 %v32, %v261
    %v418 = vsub.f32 %v33, %v264
    %v419 = vsub.f32 %v34, %v267
    %v420 = vsub.f32 %v35, %v270
    %v421 = vsub.f32 %v36, %v273
    %v422 = vsub.f32 %v37, %v276
    %v423 = vsub.f32 %v38, %v279
    %v424 = vsub.f32 %v39, %v282
    %v425 = vsub.f32 %v40, %v285
    %v426 = vsub.f32 %v41, %v288
    %v427 = vsub.f32 %v42, %v291
    %v428 = vsub.f32 %v43, %v294
    %v429 = vsub.f32 %v44, %v297
    %v430 = vsub.f32 %v45, %v300
    %v431 = vsub.f32 %v46, %v303
    %v432 = vsub.f32 %v47, %v306
    %v433 = vsub.f32 %v48, %v309
    %v434 = vsub.f32 %v49, %v312
    %v435 = vsub.f32 %v50, %v315
    %v436 = vsub.f32 %v51, %v318
    %v437 = vsub.f32 %v52, %v321
    %v438 = vsub.f32 %v53, %v324
    %v439 = vsub.f32 %v54, %v327
    %v440 = vsub.f32 %v55, %v330
    %v441 = vsub.f32 %v56, %v333
    %v442 = vsub.f32 %v57, %v336
    %v443 = vsub.f32 %v58, %v339
    %v444 = vsub.f32 %v59, %v342
    %v445 = vsub.f32 %v60, %v345
    %v446 = vsub.f32 %v61, %v348
    %v447 = vsub.f32 %v62, %v351
    %v448 = vsub.f32 %v63, %v354
    %v449 = vsub.f32 %v64, %v357
    %v450 = vsub.f32 %v65, %v360
    %v451 = vsub.f32 %v66, %v363
    %v452 = vsub.f32 %v67, %v366
    %v453 = vsub.f32 %v68, %v369
    %v454 = vsub.f32 %v69, %v372
    %v455 = vsub.f32 %v70, %v375
    %v456 = vsub.f32 %v71, %v378
    %v457 = vsub.f32 %v72, %v381
    %v458 = vsub.f32 %v73, %v384
    %v459 = vsub.f32 %v74, %v387
    %v460 = vsub.f32 %v75, %v390
    %v461 = vsub.f32 %v76, %v393
    %v462 = vsub.f32 %v77, %v396
    %v463 = vsub.f32 %v78, %v399
    %v464 = vmul.f32 %v400, 1.442695
    %v465 = vpow.pop %v464
    %v466 = vmul.f32 %v401, 1.442695
    %v467 = vpow.pop %v466
    %v468 = vmul.f32 %v402, 1.442695
    %v469 = vpow.pop %v468
    %v470 = vmul.f32 %v403, 1.442695
    %v471 = vpow.pop %v470
    %v472 = vmul.f32 %v404, 1.442695
    %v473 = vpow.pop %v472
    %v474 = vmul.f32 %v405, 1.442695
    %v475 = vpow.pop %v474
    %v476 = vmul.f32 %v406, 1.442695
    %v477 = vpow.pop %v476
    %v478 = vmul.f32 %v407, 1.442695
    %v479 = vpow.pop %v478
    %v480 = vmul.f32 %v408, 1.442695
    %v481 = vpow.pop %v480
    %v482 = vmul.f32 %v409, 1.442695
    %v483 = vpow.pop %v482
    %v484 = vmul.f32 %v410, 1.442695
    %v485 = vpow.pop %v484
    %v486 = vmul.f32 %v411, 1.442695
    %v487 = vpow.pop %v486
    %v488 = vmul.f32 %v412, 1.442695
    %v489 = vpow.pop %v488
    %v490 = vmul.f32 %v413, 1.442695
    %v491 = vpow.pop %v490
    %v492 = vmul.f32 %v414, 1.442695
    %v493 = vpow.pop %v492
    %v494 = vmul.f32 %v415, 1.442695
    %v495 = vpow.pop %v494
    %v496 = vmul.f32 %v416, 1.442695
    %v497 = vpow.pop %v496
    %v498 = vmul.f32 %v417, 1.442695
    %v499 = vpow.pop %v498
    %v500 = vmul.f32 %v418, 1.442695
    %v501 = vpow.pop %v500
    %v502 = vmul.f32 %v419, 1.442695
    %v503 = vpow.pop %v502
    %v504 = vmul.f32 %v420, 1.442695
    %v505 = vpow.pop %v504
    %v506 = vmul.f32 %v421, 1.442695
    %v507 = vpow.pop %v506
    %v508 = vmul.f32 %v422, 1.442695
    %v509 = vpow.pop %v508
    %v510 = vmul.f32 %v423, 1.442695
    %v511 = vpow.pop %v510
    %v512 = vmul.f32 %v424, 1.442695
    %v513 = vpow.pop %v512
    %v514 = vmul.f32 %v425, 1.442695
    %v515 = vpow.pop %v514
    %v516 = vmul.f32 %v426, 1.442695
    %v517 = vpow.pop %v516
    %v518 = vmul.f32 %v427, 1.442695
    %v519 = vpow.pop %v518
    %v520 = vmul.f32 %v428, 1.442695
    %v521 = vpow.pop %v520
    %v522 = vmul.f32 %v429, 1.442695
    %v523 = vpow.pop %v522
    %v524 = vmul.f32 %v430, 1.442695
    %v525 = vpow.pop %v524
    %v526 = vmul.f32 %v431, 1.442695
    %v527 = vpow.pop %v526
    %v528 = vmul.f32 %v432, 1.442695
    %v529 = vpow.pop %v528
    %v530 = vmul.f32 %v433, 1.442695
    %v531 = vpow.pop %v530
    %v532 = vmul.f32 %v434, 1.442695
    %v533 = vpow.pop %v532
    %v534 = vmul.f32 %v435, 1.442695
    %v535 = vpow.pop %v534
    %v536 = vmul.f32 %v436, 1.442695
    %v537 = vpow.pop %v536
    %v538 = vmul.f32 %v437, 1.442695
    %v539 = vpow.pop %v538
    %v540 = vmul.f32 %v438, 1.442695
    %v541 = vpow.pop %v540
    %v542 = vmul.f32 %v439, 1.442695
    %v543 = vpow.pop %v542
    %v544 = vmul.f32 %v440, 1.442695
    %v545 = vpow.pop %v544
    %v546 = vmul.f32 %v441, 1.442695
    %v547 = vpow.pop %v546
    %v548 = vmul.f32 %v442, 1.442695
    %v549 = vpow.pop %v548
    %v550 = vmul.f32 %v443, 1.442695
    %v551 = vpow.pop %v550
    %v552 = vmul.f32 %v444, 1.442695
    %v553 = vpow.pop %v552
    %v554 = vmul.f32 %v445, 1.442695
    %v555 = vpow.pop %v554
    %v556 = vmul.f32 %v446, 1.442695
    %v557 = vpow.pop %v556
    %v558 = vmul.f32 %v447, 1.442695
    %v559 = vpow.pop %v558
    %v560 = vmul.f32 %v448, 1.442695
    %v561 = vpow.pop %v560
    %v562 = vmul.f32 %v449, 1.442695
    %v563 = vpow.pop %v562
    %v564 = vmul.f32 %v450, 1.442695
    %v565 = vpow.pop %v564
    %v566 = vmul.f32 %v451, 1.442695
    %v567 = vpow.pop %v566
    %v568 = vmul.f32 %v452, 1.442695
    %v569 = vpow.pop %v568
    %v570 = vmul.f32 %v453, 1.442695
    %v571 = vpow.pop %v570
    %v572 = vmul.f32 %v454, 1.442695
    %v573 = vpow.pop %v572
    %v574 = vmul.f32 %v455, 1.442695
    %v575 = vpow.pop %v574
    %v576 = vmul.f32 %v456, 1.442695
    %v577 = vpow.pop %v576
    %v578 = vmul.f32 %v457, 1.442695
    %v579 = vpow.pop %v578
    %v580 = vmul.f32 %v458, 1.442695
    %v581 = vpow.pop %v580
    %v582 = vmul.f32 %v459, 1.442695
    %v583 = vpow.pop %v582
    %v584 = vmul.f32 %v460, 1.442695
    %v585 = vpow.pop %v584
    %v586 = vmul.f32 %v461, 1.442695
    %v587 = vpow.pop %v586
    %v588 = vmul.f32 %v462, 1.442695
    %v589 = vpow.pop %v588
    %v590 = vmul.f32 %v463, 1.442695
    %v591 = vpow.pop %v590
    %v592 = vsel %vm207, %v465, 0.0
    %593 = vadd.xlane.f32.xlu0 %v592
    %v594 = vpop.xlane.xlu0 %593
    %v595 = vsel %vm207, %v467, 0.0
    %596 = vadd.xlane.f32.xlu0 %v595
    %v597 = vpop.xlane.xlu0 %596
    %v598 = vsel %vm207, %v469, 0.0
    %599 = vadd.xlane.f32.xlu0 %v598
    %v600 = vpop.xlane.xlu0 %599
    %v601 = vsel %vm207, %v471, 0.0
    %602 = vadd.xlane.f32.xlu0 %v601
    %v603 = vpop.xlane.xlu0 %602
    %v604 = vsel %vm207, %v473, 0.0
    %605 = vadd.xlane.f32.xlu0 %v604
    %v606 = vpop.xlane.xlu0 %605
    %v607 = vsel %vm207, %v475, 0.0
    %608 = vadd.xlane.f32.xlu0 %v607
    %v609 = vpop.xlane.xlu0 %608
    %v610 = vsel %vm207, %v477, 0.0
    %611 = vadd.xlane.f32.xlu0 %v610
    %v612 = vpop.xlane.xlu0 %611
    %v613 = vsel %vm207, %v479, 0.0
    %614 = vadd.xlane.f32.xlu0 %v613
    %v615 = vpop.xlane.xlu0 %614
    %v616 = vsel %vm207, %v481, 0.0
    %617 = vadd.xlane.f32.xlu0 %v616
    %v618 = vpop.xlane.xlu0 %617
    %v619 = vsel %vm207, %v483, 0.0
    %620 = vadd.xlane.f32.xlu0 %v619
    %v621 = vpop.xlane.xlu0 %620
    %v622 = vsel %vm207, %v485, 0.0
    %623 = vadd.xlane.f32.xlu0 %v622
    %v624 = vpop.xlane.xlu0 %623
    %v625 = vsel %vm207, %v487, 0.0
    %626 = vadd.xlane.f32.xlu0 %v625
    %v627 = vpop.xlane.xlu0 %626
    %v628 = vsel %vm207, %v489, 0.0
    %629 = vadd.xlane.f32.xlu0 %v628
    %v630 = vpop.xlane.xlu0 %629
    %v631 = vsel %vm207, %v491, 0.0
    %632 = vadd.xlane.f32.xlu0 %v631
    %v633 = vpop.xlane.xlu0 %632
    %v634 = vsel %vm207, %v493, 0.0
    %635 = vadd.xlane.f32.xlu0 %v634
    %v636 = vpop.xlane.xlu0 %635
    %v637 = vsel %vm207, %v495, 0.0
    %638 = vadd.xlane.f32.xlu0 %v637
    %v639 = vpop.xlane.xlu0 %638
    %v640 = vsel %vm207, %v497, 0.0
    %641 = vadd.xlane.f32.xlu0 %v640
    %v642 = vpop.xlane.xlu0 %641
    %v643 = vsel %vm207, %v499, 0.0
    %644 = vadd.xlane.f32.xlu0 %v643
    %v645 = vpop.xlane.xlu0 %644
    %v646 = vsel %vm207, %v501, 0.0
    %647 = vadd.xlane.f32.xlu0 %v646
    %v648 = vpop.xlane.xlu0 %647
    %v649 = vsel %vm207, %v503, 0.0
    %650 = vadd.xlane.f32.xlu0 %v649
    %v651 = vpop.xlane.xlu0 %650
    %v652 = vsel %vm207, %v505, 0.0
    %653 = vadd.xlane.f32.xlu0 %v652
    %v654 = vpop.xlane.xlu0 %653
    %v655 = vsel %vm207, %v507, 0.0
    %656 = vadd.xlane.f32.xlu0 %v655
    %v657 = vpop.xlane.xlu0 %656
    %v658 = vsel %vm207, %v509, 0.0
    %659 = vadd.xlane.f32.xlu0 %v658
    %v660 = vpop.xlane.xlu0 %659
    %v661 = vsel %vm207, %v511, 0.0
    %662 = vadd.xlane.f32.xlu0 %v661
    %v663 = vpop.xlane.xlu0 %662
    %v664 = vsel %vm207, %v513, 0.0
    %665 = vadd.xlane.f32.xlu0 %v664
    %v666 = vpop.xlane.xlu0 %665
    %v667 = vsel %vm207, %v515, 0.0
    %668 = vadd.xlane.f32.xlu0 %v667
    %v669 = vpop.xlane.xlu0 %668
    %v670 = vsel %vm207, %v517, 0.0
    %671 = vadd.xlane.f32.xlu0 %v670
    %v672 = vpop.xlane.xlu0 %671
    %v673 = vsel %vm207, %v519, 0.0
    %674 = vadd.xlane.f32.xlu0 %v673
    %v675 = vpop.xlane.xlu0 %674
    %v676 = vsel %vm207, %v521, 0.0
    %677 = vadd.xlane.f32.xlu0 %v676
    %v678 = vpop.xlane.xlu0 %677
    %v679 = vsel %vm207, %v523, 0.0
    %680 = vadd.xlane.f32.xlu0 %v679
    %v681 = vpop.xlane.xlu0 %680
    %v682 = vsel %vm207, %v525, 0.0
    %683 = vadd.xlane.f32.xlu0 %v682
    %v684 = vpop.xlane.xlu0 %683
    %v685 = vsel %vm207, %v527, 0.0
    %686 = vadd.xlane.f32.xlu0 %v685
    %v687 = vpop.xlane.xlu0 %686
    %v688 = vsel %vm207, %v529, 0.0
    %689 = vadd.xlane.f32.xlu0 %v688
    %v690 = vpop.xlane.xlu0 %689
    %v691 = vsel %vm207, %v531, 0.0
    %692 = vadd.xlane.f32.xlu0 %v691
    %v693 = vpop.xlane.xlu0 %692
    %v694 = vsel %vm207, %v533, 0.0
    %695 = vadd.xlane.f32.xlu0 %v694
    %v696 = vpop.xlane.xlu0 %695
    %v697 = vsel %vm207, %v535, 0.0
    %698 = vadd.xlane.f32.xlu0 %v697
    %v699 = vpop.xlane.xlu0 %698
    %v700 = vsel %vm207, %v537, 0.0
    %701 = vadd.xlane.f32.xlu0 %v700
    %v702 = vpop.xlane.xlu0 %701
    %v703 = vsel %vm207, %v539, 0.0
    %704 = vadd.xlane.f32.xlu0 %v703
    %v705 = vpop.xlane.xlu0 %704
    %v706 = vsel %vm207, %v541, 0.0
    %707 = vadd.xlane.f32.xlu0 %v706
    %v708 = vpop.xlane.xlu0 %707
    %v709 = vsel %vm207, %v543, 0.0
    %710 = vadd.xlane.f32.xlu0 %v709
    %v711 = vpop.xlane.xlu0 %710
    %v712 = vsel %vm207, %v545, 0.0
    %713 = vadd.xlane.f32.xlu0 %v712
    %v714 = vpop.xlane.xlu0 %713
    %v715 = vsel %vm207, %v547, 0.0
    %716 = vadd.xlane.f32.xlu0 %v715
    %v717 = vpop.xlane.xlu0 %716
    %v718 = vsel %vm207, %v549, 0.0
    %719 = vadd.xlane.f32.xlu0 %v718
    %v720 = vpop.xlane.xlu0 %719
    %v721 = vsel %vm207, %v551, 0.0
    %722 = vadd.xlane.f32.xlu0 %v721
    %v723 = vpop.xlane.xlu0 %722
    %v724 = vsel %vm207, %v553, 0.0
    %725 = vadd.xlane.f32.xlu0 %v724
    %v726 = vpop.xlane.xlu0 %725
    %v727 = vsel %vm207, %v555, 0.0
    %728 = vadd.xlane.f32.xlu0 %v727
    %v729 = vpop.xlane.xlu0 %728
    %v730 = vsel %vm207, %v557, 0.0
    %731 = vadd.xlane.f32.xlu0 %v730
    %v732 = vpop.xlane.xlu0 %731
    %v733 = vsel %vm207, %v559, 0.0
    %734 = vadd.xlane.f32.xlu0 %v733
    %v735 = vpop.xlane.xlu0 %734
    %v736 = vsel %vm207, %v561, 0.0
    %737 = vadd.xlane.f32.xlu0 %v736
    %v738 = vpop.xlane.xlu0 %737
    %v739 = vsel %vm207, %v563, 0.0
    %740 = vadd.xlane.f32.xlu0 %v739
    %v741 = vpop.xlane.xlu0 %740
    %v742 = vsel %vm207, %v565, 0.0
    %743 = vadd.xlane.f32.xlu0 %v742
    %v744 = vpop.xlane.xlu0 %743
    %v745 = vsel %vm207, %v567, 0.0
    %746 = vadd.xlane.f32.xlu0 %v745
    %v747 = vpop.xlane.xlu0 %746
    %v748 = vsel %vm207, %v569, 0.0
    %749 = vadd.xlane.f32.xlu0 %v748
    %v750 = vpop.xlane.xlu0 %749
    %v751 = vsel %vm207, %v571, 0.0
    %752 = vadd.xlane.f32.xlu0 %v751
    %v753 = vpop.xlane.xlu0 %752
    %v754 = vsel %vm207, %v573, 0.0
    %755 = vadd.xlane.f32.xlu0 %v754
    %v756 = vpop.xlane.xlu0 %755
    %v757 = vsel %vm207, %v575, 0.0
    %758 = vadd.xlane.f32.xlu0 %v757
    %v759 = vpop.xlane.xlu0 %758
    %v760 = vsel %vm207, %v577, 0.0
    %761 = vadd.xlane.f32.xlu0 %v760
    %v762 = vpop.xlane.xlu0 %761
    %v763 = vsel %vm207, %v579, 0.0
    %764 = vadd.xlane.f32.xlu0 %v763
    %v765 = vpop.xlane.xlu0 %764
    %v766 = vsel %vm207, %v581, 0.0
    %767 = vadd.xlane.f32.xlu0 %v766
    %v768 = vpop.xlane.xlu0 %767
    %v769 = vsel %vm207, %v583, 0.0
    %770 = vadd.xlane.f32.xlu0 %v769
    %v771 = vpop.xlane.xlu0 %770
    %v772 = vsel %vm207, %v585, 0.0
    %773 = vadd.xlane.f32.xlu0 %v772
    %v774 = vpop.xlane.xlu0 %773
    %v775 = vsel %vm207, %v587, 0.0
    %776 = vadd.xlane.f32.xlu0 %v775
    %v777 = vpop.xlane.xlu0 %776
    %v778 = vsel %vm207, %v589, 0.0
    %779 = vadd.xlane.f32.xlu0 %v778
    %v780 = vpop.xlane.xlu0 %779
    %v781 = vsel %vm207, %v591, 0.0
    %782 = vadd.xlane.f32.xlu0 %v781
    %v783 = vpop.xlane.xlu0 %782
    %v784 = vlog2.pop %v594
    %v785 = vmul.f32 %v784, 0.6931472
    %v786 = vlog2.pop %v597
    %v787 = vmul.f32 %v786, 0.6931472
    %v788 = vlog2.pop %v600
    %v789 = vmul.f32 %v788, 0.6931472
    %v790 = vlog2.pop %v603
    %v791 = vmul.f32 %v790, 0.6931472
    %v792 = vlog2.pop %v606
    %v793 = vmul.f32 %v792, 0.6931472
    %v794 = vlog2.pop %v609
    %v795 = vmul.f32 %v794, 0.6931472
    %v796 = vlog2.pop %v612
    %v797 = vmul.f32 %v796, 0.6931472
    %v798 = vlog2.pop %v615
    %v799 = vmul.f32 %v798, 0.6931472
    %v800 = vlog2.pop %v618
    %v801 = vmul.f32 %v800, 0.6931472
    %v802 = vlog2.pop %v621
    %v803 = vmul.f32 %v802, 0.6931472
    %v804 = vlog2.pop %v624
    %v805 = vmul.f32 %v804, 0.6931472
    %v806 = vlog2.pop %v627
    %v807 = vmul.f32 %v806, 0.6931472
    %v808 = vlog2.pop %v630
    %v809 = vmul.f32 %v808, 0.6931472
    %v810 = vlog2.pop %v633
    %v811 = vmul.f32 %v810, 0.6931472
    %v812 = vlog2.pop %v636
    %v813 = vmul.f32 %v812, 0.6931472
    %v814 = vlog2.pop %v639
    %v815 = vmul.f32 %v814, 0.6931472
    %v816 = vlog2.pop %v642
    %v817 = vmul.f32 %v816, 0.6931472
    %v818 = vlog2.pop %v645
    %v819 = vmul.f32 %v818, 0.6931472
    %v820 = vlog2.pop %v648
    %v821 = vmul.f32 %v820, 0.6931472
    %v822 = vlog2.pop %v651
    %v823 = vmul.f32 %v822, 0.6931472
    %v824 = vlog2.pop %v654
    %v825 = vmul.f32 %v824, 0.6931472
    %v826 = vlog2.pop %v657
    %v827 = vmul.f32 %v826, 0.6931472
    %v828 = vlog2.pop %v660
    %v829 = vmul.f32 %v828, 0.6931472
    %v830 = vlog2.pop %v663
    %v831 = vmul.f32 %v830, 0.6931472
    %v832 = vlog2.pop %v666
    %v833 = vmul.f32 %v832, 0.6931472
    %v834 = vlog2.pop %v669
    %v835 = vmul.f32 %v834, 0.6931472
    %v836 = vlog2.pop %v672
    %v837 = vmul.f32 %v836, 0.6931472
    %v838 = vlog2.pop %v675
    %v839 = vmul.f32 %v838, 0.6931472
    %v840 = vlog2.pop %v678
    %v841 = vmul.f32 %v840, 0.6931472
    %v842 = vlog2.pop %v681
    %v843 = vmul.f32 %v842, 0.6931472
    %v844 = vlog2.pop %v684
    %v845 = vmul.f32 %v844, 0.6931472
    %v846 = vlog2.pop %v687
    %v847 = vmul.f32 %v846, 0.6931472
    %v848 = vlog2.pop %v690
    %v849 = vmul.f32 %v848, 0.6931472
    %v850 = vlog2.pop %v693
    %v851 = vmul.f32 %v850, 0.6931472
    %v852 = vlog2.pop %v696
    %v853 = vmul.f32 %v852, 0.6931472
    %v854 = vlog2.pop %v699
    %v855 = vmul.f32 %v854, 0.6931472
    %v856 = vlog2.pop %v702
    %v857 = vmul.f32 %v856, 0.6931472
    %v858 = vlog2.pop %v705
    %v859 = vmul.f32 %v858, 0.6931472
    %v860 = vlog2.pop %v708
    %v861 = vmul.f32 %v860, 0.6931472
    %v862 = vlog2.pop %v711
    %v863 = vmul.f32 %v862, 0.6931472
    %v864 = vlog2.pop %v714
    %v865 = vmul.f32 %v864, 0.6931472
    %v866 = vlog2.pop %v717
    %v867 = vmul.f32 %v866, 0.6931472
    %v868 = vlog2.pop %v720
    %v869 = vmul.f32 %v868, 0.6931472
    %v870 = vlog2.pop %v723
    %v871 = vmul.f32 %v870, 0.6931472
    %v872 = vlog2.pop %v726
    %v873 = vmul.f32 %v872, 0.6931472
    %v874 = vlog2.pop %v729
    %v875 = vmul.f32 %v874, 0.6931472
    %v876 = vlog2.pop %v732
    %v877 = vmul.f32 %v876, 0.6931472
    %v878 = vlog2.pop %v735
    %v879 = vmul.f32 %v878, 0.6931472
    %v880 = vlog2.pop %v738
    %v881 = vmul.f32 %v880, 0.6931472
    %v882 = vlog2.pop %v741
    %v883 = vmul.f32 %v882, 0.6931472
    %v884 = vlog2.pop %v744
    %v885 = vmul.f32 %v884, 0.6931472
    %v886 = vlog2.pop %v747
    %v887 = vmul.f32 %v886, 0.6931472
    %v888 = vlog2.pop %v750
    %v889 = vmul.f32 %v888, 0.6931472
    %v890 = vlog2.pop %v753
    %v891 = vmul.f32 %v890, 0.6931472
    %v892 = vlog2.pop %v756
    %v893 = vmul.f32 %v892, 0.6931472
    %v894 = vlog2.pop %v759
    %v895 = vmul.f32 %v894, 0.6931472
    %v896 = vlog2.pop %v762
    %v897 = vmul.f32 %v896, 0.6931472
    %v898 = vlog2.pop %v765
    %v899 = vmul.f32 %v898, 0.6931472
    %v900 = vlog2.pop %v768
    %v901 = vmul.f32 %v900, 0.6931472
    %v902 = vlog2.pop %v771
    %v903 = vmul.f32 %v902, 0.6931472
    %v904 = vlog2.pop %v774
    %v905 = vmul.f32 %v904, 0.6931472
    %v906 = vlog2.pop %v777
    %v907 = vmul.f32 %v906, 0.6931472
    %v908 = vlog2.pop %v780
    %v909 = vmul.f32 %v908, 0.6931472
    %v910 = vlog2.pop %v783
    %v911 = vmul.f32 %v910, 0.6931472
    %v912 = vlaneseq
    %v913 = vand.u32 %v912, 127
    %914 = vset.pattern.permute.xlu0 0
    %915 = vperm.xlu0 %914, %v79
    %v916 = vpop.permute.xlu0 %915
    %917 = vset.pattern.permute.xlu0 0
    %918 = vperm.xlu0 %917, %v80
    %v919 = vpop.permute.xlu0 %918
    %920 = vset.pattern.permute.xlu0 0
    %921 = vperm.xlu0 %920, %v81
    %v922 = vpop.permute.xlu0 %921
    %923 = vset.pattern.permute.xlu0 0
    %924 = vperm.xlu0 %923, %v82
    %v925 = vpop.permute.xlu0 %924
    %926 = vset.pattern.permute.xlu0 0
    %927 = vperm.xlu0 %926, %v83
    %v928 = vpop.permute.xlu0 %927
    %929 = vset.pattern.permute.xlu0 0
    %930 = vperm.xlu0 %929, %v84
    %v931 = vpop.permute.xlu0 %930
    %932 = vset.pattern.permute.xlu0 0
    %933 = vperm.xlu0 %932, %v85
    %v934 = vpop.permute.xlu0 %933
    %935 = vset.pattern.permute.xlu0 0
    %936 = vperm.xlu0 %935, %v86
    %v937 = vpop.permute.xlu0 %936
    %938 = vset.pattern.permute.xlu0 0
    %939 = vperm.xlu0 %938, %v87
    %v940 = vpop.permute.xlu0 %939
    %941 = vset.pattern.permute.xlu0 0
    %942 = vperm.xlu0 %941, %v88
    %v943 = vpop.permute.xlu0 %942
    %944 = vset.pattern.permute.xlu0 0
    %945 = vperm.xlu0 %944, %v89
    %v946 = vpop.permute.xlu0 %945
    %947 = vset.pattern.permute.xlu0 0
    %948 = vperm.xlu0 %947, %v90
    %v949 = vpop.permute.xlu0 %948
    %950 = vset.pattern.permute.xlu0 0
    %951 = vperm.xlu0 %950, %v91
    %v952 = vpop.permute.xlu0 %951
    %953 = vset.pattern.permute.xlu0 0
    %954 = vperm.xlu0 %953, %v92
    %v955 = vpop.permute.xlu0 %954
    %956 = vset.pattern.permute.xlu0 0
    %957 = vperm.xlu0 %956, %v93
    %v958 = vpop.permute.xlu0 %957
    %959 = vset.pattern.permute.xlu0 0
    %960 = vperm.xlu0 %959, %v94
    %v961 = vpop.permute.xlu0 %960
    %962 = vset.pattern.permute.xlu0 0
    %963 = vperm.xlu0 %962, %v95
    %v964 = vpop.permute.xlu0 %963
    %965 = vset.pattern.permute.xlu0 0
    %966 = vperm.xlu0 %965, %v96
    %v967 = vpop.permute.xlu0 %966
    %968 = vset.pattern.permute.xlu0 0
    %969 = vperm.xlu0 %968, %v97
    %v970 = vpop.permute.xlu0 %969
    %971 = vset.pattern.permute.xlu0 0
    %972 = vperm.xlu0 %971, %v98
    %v973 = vpop.permute.xlu0 %972
    %974 = vset.pattern.permute.xlu0 0
    %975 = vperm.xlu0 %974, %v99
    %v976 = vpop.permute.xlu0 %975
    %977 = vset.pattern.permute.xlu0 0
    %978 = vperm.xlu0 %977, %v100
    %v979 = vpop.permute.xlu0 %978
    %980 = vset.pattern.permute.xlu0 0
    %981 = vperm.xlu0 %980, %v101
    %v982 = vpop.permute.xlu0 %981
    %983 = vset.pattern.permute.xlu0 0
    %984 = vperm.xlu0 %983, %v102
    %v985 = vpop.permute.xlu0 %984
    %986 = vset.pattern.permute.xlu0 0
    %987 = vperm.xlu0 %986, %v103
    %v988 = vpop.permute.xlu0 %987
    %989 = vset.pattern.permute.xlu0 0
    %990 = vperm.xlu0 %989, %v104
    %v991 = vpop.permute.xlu0 %990
    %992 = vset.pattern.permute.xlu0 0
    %993 = vperm.xlu0 %992, %v105
    %v994 = vpop.permute.xlu0 %993
    %995 = vset.pattern.permute.xlu0 0
    %996 = vperm.xlu0 %995, %v106
    %v997 = vpop.permute.xlu0 %996
    %998 = vset.pattern.permute.xlu0 0
    %999 = vperm.xlu0 %998, %v107
    %v1000 = vpop.permute.xlu0 %999
    %1001 = vset.pattern.permute.xlu0 0
    %1002 = vperm.xlu0 %1001, %v108
    %v1003 = vpop.permute.xlu0 %1002
    %1004 = vset.pattern.permute.xlu0 0
    %1005 = vperm.xlu0 %1004, %v109
    %v1006 = vpop.permute.xlu0 %1005
    %1007 = vset.pattern.permute.xlu0 0
    %1008 = vperm.xlu0 %1007, %v110
    %v1009 = vpop.permute.xlu0 %1008
    %1010 = vset.pattern.permute.xlu0 0
    %1011 = vperm.xlu0 %1010, %v111
    %v1012 = vpop.permute.xlu0 %1011
    %1013 = vset.pattern.permute.xlu0 0
    %1014 = vperm.xlu0 %1013, %v112
    %v1015 = vpop.permute.xlu0 %1014
    %1016 = vset.pattern.permute.xlu0 0
    %1017 = vperm.xlu0 %1016, %v113
    %v1018 = vpop.permute.xlu0 %1017
    %1019 = vset.pattern.permute.xlu0 0
    %1020 = vperm.xlu0 %1019, %v114
    %v1021 = vpop.permute.xlu0 %1020
    %1022 = vset.pattern.permute.xlu0 0
    %1023 = vperm.xlu0 %1022, %v115
    %v1024 = vpop.permute.xlu0 %1023
    %1025 = vset.pattern.permute.xlu0 0
    %1026 = vperm.xlu0 %1025, %v116
    %v1027 = vpop.permute.xlu0 %1026
    %1028 = vset.pattern.permute.xlu0 0
    %1029 = vperm.xlu0 %1028, %v117
    %v1030 = vpop.permute.xlu0 %1029
    %1031 = vset.pattern.permute.xlu0 0
    %1032 = vperm.xlu0 %1031, %v118
    %v1033 = vpop.permute.xlu0 %1032
    %1034 = vset.pattern.permute.xlu0 0
    %1035 = vperm.xlu0 %1034, %v119
    %v1036 = vpop.permute.xlu0 %1035
    %1037 = vset.pattern.permute.xlu0 0
    %1038 = vperm.xlu0 %1037, %v120
    %v1039 = vpop.permute.xlu0 %1038
    %1040 = vset.pattern.permute.xlu0 0
    %1041 = vperm.xlu0 %1040, %v121
    %v1042 = vpop.permute.xlu0 %1041
    %1043 = vset.pattern.permute.xlu0 0
    %1044 = vperm.xlu0 %1043, %v122
    %v1045 = vpop.permute.xlu0 %1044
    %1046 = vset.pattern.permute.xlu0 0
    %1047 = vperm.xlu0 %1046, %v123
    %v1048 = vpop.permute.xlu0 %1047
    %1049 = vset.pattern.permute.xlu0 0
    %1050 = vperm.xlu0 %1049, %v124
    %v1051 = vpop.permute.xlu0 %1050
    %1052 = vset.pattern.permute.xlu0 0
    %1053 = vperm.xlu0 %1052, %v125
    %v1054 = vpop.permute.xlu0 %1053
    %1055 = vset.pattern.permute.xlu0 0
    %1056 = vperm.xlu0 %1055, %v126
    %v1057 = vpop.permute.xlu0 %1056
    %1058 = vset.pattern.permute.xlu0 0
    %1059 = vperm.xlu0 %1058, %v127
    %v1060 = vpop.permute.xlu0 %1059
    %1061 = vset.pattern.permute.xlu0 0
    %1062 = vperm.xlu0 %1061, %v128
    %v1063 = vpop.permute.xlu0 %1062
    %1064 = vset.pattern.permute.xlu0 0
    %1065 = vperm.xlu0 %1064, %v129
    %v1066 = vpop.permute.xlu0 %1065
    %1067 = vset.pattern.permute.xlu0 0
    %1068 = vperm.xlu0 %1067, %v130
    %v1069 = vpop.permute.xlu0 %1068
    %1070 = vset.pattern.permute.xlu0 0
    %1071 = vperm.xlu0 %1070, %v131
    %v1072 = vpop.permute.xlu0 %1071
    %1073 = vset.pattern.permute.xlu0 0
    %1074 = vperm.xlu0 %1073, %v132
    %v1075 = vpop.permute.xlu0 %1074
    %1076 = vset.pattern.permute.xlu0 0
    %1077 = vperm.xlu0 %1076, %v133
    %v1078 = vpop.permute.xlu0 %1077
    %1079 = vset.pattern.permute.xlu0 0
    %1080 = vperm.xlu0 %1079, %v134
    %v1081 = vpop.permute.xlu0 %1080
    %1082 = vset.pattern.permute.xlu0 0
    %1083 = vperm.xlu0 %1082, %v135
    %v1084 = vpop.permute.xlu0 %1083
    %1085 = vset.pattern.permute.xlu0 0
    %1086 = vperm.xlu0 %1085, %v136
    %v1087 = vpop.permute.xlu0 %1086
    %1088 = vset.pattern.permute.xlu0 0
    %1089 = vperm.xlu0 %1088, %v137
    %v1090 = vpop.permute.xlu0 %1089
    %1091 = vset.pattern.permute.xlu0 0
    %1092 = vperm.xlu0 %1091, %v138
    %v1093 = vpop.permute.xlu0 %1092
    %1094 = vset.pattern.permute.xlu0 0
    %1095 = vperm.xlu0 %1094, %v139
    %v1096 = vpop.permute.xlu0 %1095
    %1097 = vset.pattern.permute.xlu0 0
    %1098 = vperm.xlu0 %1097, %v140
    %v1099 = vpop.permute.xlu0 %1098
    %1100 = vset.pattern.permute.xlu0 0
    %1101 = vperm.xlu0 %1100, %v141
    %v1102 = vpop.permute.xlu0 %1101
    %1103 = vset.pattern.permute.xlu0 0
    %1104 = vperm.xlu0 %1103, %v142
    %v1105 = vpop.permute.xlu0 %1104
    %vm1106 = vcmp.eq.s32.totalorder %v913, %v916
    %vm1107 = vcmp.eq.s32.totalorder %v913, %v919
    %vm1108 = vcmp.eq.s32.totalorder %v913, %v922
    %vm1109 = vcmp.eq.s32.totalorder %v913, %v925
    %vm1110 = vcmp.eq.s32.totalorder %v913, %v928
    %vm1111 = vcmp.eq.s32.totalorder %v913, %v931
    %vm1112 = vcmp.eq.s32.totalorder %v913, %v934
    %vm1113 = vcmp.eq.s32.totalorder %v913, %v937
    %vm1114 = vcmp.eq.s32.totalorder %v913, %v940
    %vm1115 = vcmp.eq.s32.totalorder %v913, %v943
    %vm1116 = vcmp.eq.s32.totalorder %v913, %v946
    %vm1117 = vcmp.eq.s32.totalorder %v913, %v949
    %vm1118 = vcmp.eq.s32.totalorder %v913, %v952
    %vm1119 = vcmp.eq.s32.totalorder %v913, %v955
    %vm1120 = vcmp.eq.s32.totalorder %v913, %v958
    %vm1121 = vcmp.eq.s32.totalorder %v913, %v961
    %vm1122 = vcmp.eq.s32.totalorder %v913, %v964
    %vm1123 = vcmp.eq.s32.totalorder %v913, %v967
    %vm1124 = vcmp.eq.s32.totalorder %v913, %v970
    %vm1125 = vcmp.eq.s32.totalorder %v913, %v973
    %vm1126 = vcmp.eq.s32.totalorder %v913, %v976
    %vm1127 = vcmp.eq.s32.totalorder %v913, %v979
    %vm1128 = vcmp.eq.s32.totalorder %v913, %v982
    %vm1129 = vcmp.eq.s32.totalorder %v913, %v985
    %vm1130 = vcmp.eq.s32.totalorder %v913, %v988
    %vm1131 = vcmp.eq.s32.totalorder %v913, %v991
    %vm1132 = vcmp.eq.s32.totalorder %v913, %v994
    %vm1133 = vcmp.eq.s32.totalorder %v913, %v997
    %vm1134 = vcmp.eq.s32.totalorder %v913, %v1000
    %vm1135 = vcmp.eq.s32.totalorder %v913, %v1003
    %vm1136 = vcmp.eq.s32.totalorder %v913, %v1006
    %vm1137 = vcmp.eq.s32.totalorder %v913, %v1009
    %vm1138 = vcmp.eq.s32.totalorder %v913, %v1012
    %vm1139 = vcmp.eq.s32.totalorder %v913, %v1015
    %vm1140 = vcmp.eq.s32.totalorder %v913, %v1018
    %vm1141 = vcmp.eq.s32.totalorder %v913, %v1021
    %vm1142 = vcmp.eq.s32.totalorder %v913, %v1024
    %vm1143 = vcmp.eq.s32.totalorder %v913, %v1027
    %vm1144 = vcmp.eq.s32.totalorder %v913, %v1030
    %vm1145 = vcmp.eq.s32.totalorder %v913, %v1033
    %vm1146 = vcmp.eq.s32.totalorder %v913, %v1036
    %vm1147 = vcmp.eq.s32.totalorder %v913, %v1039
    %vm1148 = vcmp.eq.s32.totalorder %v913, %v1042
    %vm1149 = vcmp.eq.s32.totalorder %v913, %v1045
    %vm1150 = vcmp.eq.s32.totalorder %v913, %v1048
    %vm1151 = vcmp.eq.s32.totalorder %v913, %v1051
    %vm1152 = vcmp.eq.s32.totalorder %v913, %v1054
    %vm1153 = vcmp.eq.s32.totalorder %v913, %v1057
    %vm1154 = vcmp.eq.s32.totalorder %v913, %v1060
    %vm1155 = vcmp.eq.s32.totalorder %v913, %v1063
    %vm1156 = vcmp.eq.s32.totalorder %v913, %v1066
    %vm1157 = vcmp.eq.s32.totalorder %v913, %v1069
    %vm1158 = vcmp.eq.s32.totalorder %v913, %v1072
    %vm1159 = vcmp.eq.s32.totalorder %v913, %v1075
    %vm1160 = vcmp.eq.s32.totalorder %v913, %v1078
    %vm1161 = vcmp.eq.s32.totalorder %v913, %v1081
    %vm1162 = vcmp.eq.s32.totalorder %v913, %v1084
    %vm1163 = vcmp.eq.s32.totalorder %v913, %v1087
    %vm1164 = vcmp.eq.s32.totalorder %v913, %v1090
    %vm1165 = vcmp.eq.s32.totalorder %v913, %v1093
    %vm1166 = vcmp.eq.s32.totalorder %v913, %v1096
    %vm1167 = vcmp.eq.s32.totalorder %v913, %v1099
    %vm1168 = vcmp.eq.s32.totalorder %v913, %v1102
    %vm1169 = vcmp.eq.s32.totalorder %v913, %v1105
    %v1170 = vsel %vm1106, %v400, 0.0
    %v1171 = vsel %vm1107, %v401, 0.0
    %v1172 = vsel %vm1108, %v402, 0.0
    %v1173 = vsel %vm1109, %v403, 0.0
    %v1174 = vsel %vm1110, %v404, 0.0
    %v1175 = vsel %vm1111, %v405, 0.0
    %v1176 = vsel %vm1112, %v406, 0.0
    %v1177 = vsel %vm1113, %v407, 0.0
    %v1178 = vsel %vm1114, %v408, 0.0
    %v1179 = vsel %vm1115, %v409, 0.0
    %v1180 = vsel %vm1116, %v410, 0.0
    %v1181 = vsel %vm1117, %v411, 0.0
    %v1182 = vsel %vm1118, %v412, 0.0
    %v1183 = vsel %vm1119, %v413, 0.0
    %v1184 = vsel %vm1120, %v414, 0.0
    %v1185 = vsel %vm1121, %v415, 0.0
    %v1186 = vsel %vm1122, %v416, 0.0
    %v1187 = vsel %vm1123, %v417, 0.0
    %v1188 = vsel %vm1124, %v418, 0.0
    %v1189 = vsel %vm1125, %v419, 0.0
    %v1190 = vsel %vm1126, %v420, 0.0
    %v1191 = vsel %vm1127, %v421, 0.0
    %v1192 = vsel %vm1128, %v422, 0.0
    %v1193 = vsel %vm1129, %v423, 0.0
    %v1194 = vsel %vm1130, %v424, 0.0
    %v1195 = vsel %vm1131, %v425, 0.0
    %v1196 = vsel %vm1132, %v426, 0.0
    %v1197 = vsel %vm1133, %v427, 0.0
    %v1198 = vsel %vm1134, %v428, 0.0
    %v1199 = vsel %vm1135, %v429, 0.0
    %v1200 = vsel %vm1136, %v430, 0.0
    %v1201 = vsel %vm1137, %v431, 0.0
    %v1202 = vsel %vm1138, %v432, 0.0
    %v1203 = vsel %vm1139, %v433, 0.0
    %v1204 = vsel %vm1140, %v434, 0.0
    %v1205 = vsel %vm1141, %v435, 0.0
    %v1206 = vsel %vm1142, %v436, 0.0
    %v1207 = vsel %vm1143, %v437, 0.0
    %v1208 = vsel %vm1144, %v438, 0.0
    %v1209 = vsel %vm1145, %v439, 0.0
    %v1210 = vsel %vm1146, %v440, 0.0
    %v1211 = vsel %vm1147, %v441, 0.0
    %v1212 = vsel %vm1148, %v442, 0.0
    %v1213 = vsel %vm1149, %v443, 0.0
    %v1214 = vsel %vm1150, %v444, 0.0
    %v1215 = vsel %vm1151, %v445, 0.0
    %v1216 = vsel %vm1152, %v446, 0.0
    %v1217 = vsel %vm1153, %v447, 0.0
    %v1218 = vsel %vm1154, %v448, 0.0
    %v1219 = vsel %vm1155, %v449, 0.0
    %v1220 = vsel %vm1156, %v450, 0.0
    %v1221 = vsel %vm1157, %v451, 0.0
    %v1222 = vsel %vm1158, %v452, 0.0
    %v1223 = vsel %vm1159, %v453, 0.0
    %v1224 = vsel %vm1160, %v454, 0.0
    %v1225 = vsel %vm1161, %v455, 0.0
    %v1226 = vsel %vm1162, %v456, 0.0
    %v1227 = vsel %vm1163, %v457, 0.0
    %v1228 = vsel %vm1164, %v458, 0.0
    %v1229 = vsel %vm1165, %v459, 0.0
    %v1230 = vsel %vm1166, %v460, 0.0
    %v1231 = vsel %vm1167, %v461, 0.0
    %v1232 = vsel %vm1168, %v462, 0.0
    %v1233 = vsel %vm1169, %v463, 0.0
    %v1234 = vsel %vm207, %v1170, 0.0
    %1235 = vadd.xlane.f32.xlu0 %v1234
    %v1236 = vpop.xlane.xlu0 %1235
    %v1237 = vsel %vm207, %v1171, 0.0
    %1238 = vadd.xlane.f32.xlu0 %v1237
    %v1239 = vpop.xlane.xlu0 %1238
    %v1240 = vsel %vm207, %v1172, 0.0
    %1241 = vadd.xlane.f32.xlu0 %v1240
    %v1242 = vpop.xlane.xlu0 %1241
    %v1243 = vsel %vm207, %v1173, 0.0
    %1244 = vadd.xlane.f32.xlu0 %v1243
    %v1245 = vpop.xlane.xlu0 %1244
    %v1246 = vsel %vm207, %v1174, 0.0
    %1247 = vadd.xlane.f32.xlu0 %v1246
    %v1248 = vpop.xlane.xlu0 %1247
    %v1249 = vsel %vm207, %v1175, 0.0
    %1250 = vadd.xlane.f32.xlu0 %v1249
    %v1251 = vpop.xlane.xlu0 %1250
    %v1252 = vsel %vm207, %v1176, 0.0
    %1253 = vadd.xlane.f32.xlu0 %v1252
    %v1254 = vpop.xlane.xlu0 %1253
    %v1255 = vsel %vm207, %v1177, 0.0
    %1256 = vadd.xlane.f32.xlu0 %v1255
    %v1257 = vpop.xlane.xlu0 %1256
    %v1258 = vsel %vm207, %v1178, 0.0
    %1259 = vadd.xlane.f32.xlu0 %v1258
    %v1260 = vpop.xlane.xlu0 %1259
    %v1261 = vsel %vm207, %v1179, 0.0
    %1262 = vadd.xlane.f32.xlu0 %v1261
    %v1263 = vpop.xlane.xlu0 %1262
    %v1264 = vsel %vm207, %v1180, 0.0
    %1265 = vadd.xlane.f32.xlu0 %v1264
    %v1266 = vpop.xlane.xlu0 %1265
    %v1267 = vsel %vm207, %v1181, 0.0
    %1268 = vadd.xlane.f32.xlu0 %v1267
    %v1269 = vpop.xlane.xlu0 %1268
    %v1270 = vsel %vm207, %v1182, 0.0
    %1271 = vadd.xlane.f32.xlu0 %v1270
    %v1272 = vpop.xlane.xlu0 %1271
    %v1273 = vsel %vm207, %v1183, 0.0
    %1274 = vadd.xlane.f32.xlu0 %v1273
    %v1275 = vpop.xlane.xlu0 %1274
    %v1276 = vsel %vm207, %v1184, 0.0
    %1277 = vadd.xlane.f32.xlu0 %v1276
    %v1278 = vpop.xlane.xlu0 %1277
    %v1279 = vsel %vm207, %v1185, 0.0
    %1280 = vadd.xlane.f32.xlu0 %v1279
    %v1281 = vpop.xlane.xlu0 %1280
    %v1282 = vsel %vm207, %v1186, 0.0
    %1283 = vadd.xlane.f32.xlu0 %v1282
    %v1284 = vpop.xlane.xlu0 %1283
    %v1285 = vsel %vm207, %v1187, 0.0
    %1286 = vadd.xlane.f32.xlu0 %v1285
    %v1287 = vpop.xlane.xlu0 %1286
    %v1288 = vsel %vm207, %v1188, 0.0
    %1289 = vadd.xlane.f32.xlu0 %v1288
    %v1290 = vpop.xlane.xlu0 %1289
    %v1291 = vsel %vm207, %v1189, 0.0
    %1292 = vadd.xlane.f32.xlu0 %v1291
    %v1293 = vpop.xlane.xlu0 %1292
    %v1294 = vsel %vm207, %v1190, 0.0
    %1295 = vadd.xlane.f32.xlu0 %v1294
    %v1296 = vpop.xlane.xlu0 %1295
    %v1297 = vsel %vm207, %v1191, 0.0
    %1298 = vadd.xlane.f32.xlu0 %v1297
    %v1299 = vpop.xlane.xlu0 %1298
    %v1300 = vsel %vm207, %v1192, 0.0
    %1301 = vadd.xlane.f32.xlu0 %v1300
    %v1302 = vpop.xlane.xlu0 %1301
    %v1303 = vsel %vm207, %v1193, 0.0
    %1304 = vadd.xlane.f32.xlu0 %v1303
    %v1305 = vpop.xlane.xlu0 %1304
    %v1306 = vsel %vm207, %v1194, 0.0
    %1307 = vadd.xlane.f32.xlu0 %v1306
    %v1308 = vpop.xlane.xlu0 %1307
    %v1309 = vsel %vm207, %v1195, 0.0
    %1310 = vadd.xlane.f32.xlu0 %v1309
    %v1311 = vpop.xlane.xlu0 %1310
    %v1312 = vsel %vm207, %v1196, 0.0
    %1313 = vadd.xlane.f32.xlu0 %v1312
    %v1314 = vpop.xlane.xlu0 %1313
    %v1315 = vsel %vm207, %v1197, 0.0
    %1316 = vadd.xlane.f32.xlu0 %v1315
    %v1317 = vpop.xlane.xlu0 %1316
    %v1318 = vsel %vm207, %v1198, 0.0
    %1319 = vadd.xlane.f32.xlu0 %v1318
    %v1320 = vpop.xlane.xlu0 %1319
    %v1321 = vsel %vm207, %v1199, 0.0
    %1322 = vadd.xlane.f32.xlu0 %v1321
    %v1323 = vpop.xlane.xlu0 %1322
    %v1324 = vsel %vm207, %v1200, 0.0
    %1325 = vadd.xlane.f32.xlu0 %v1324
    %v1326 = vpop.xlane.xlu0 %1325
    %v1327 = vsel %vm207, %v1201, 0.0
    %1328 = vadd.xlane.f32.xlu0 %v1327
    %v1329 = vpop.xlane.xlu0 %1328
    %v1330 = vsel %vm207, %v1202, 0.0
    %1331 = vadd.xlane.f32.xlu0 %v1330
    %v1332 = vpop.xlane.xlu0 %1331
    %v1333 = vsel %vm207, %v1203, 0.0
    %1334 = vadd.xlane.f32.xlu0 %v1333
    %v1335 = vpop.xlane.xlu0 %1334
    %v1336 = vsel %vm207, %v1204, 0.0
    %1337 = vadd.xlane.f32.xlu0 %v1336
    %v1338 = vpop.xlane.xlu0 %1337
    %v1339 = vsel %vm207, %v1205, 0.0
    %1340 = vadd.xlane.f32.xlu0 %v1339
    %v1341 = vpop.xlane.xlu0 %1340
    %v1342 = vsel %vm207, %v1206, 0.0
    %1343 = vadd.xlane.f32.xlu0 %v1342
    %v1344 = vpop.xlane.xlu0 %1343
    %v1345 = vsel %vm207, %v1207, 0.0
    %1346 = vadd.xlane.f32.xlu0 %v1345
    %v1347 = vpop.xlane.xlu0 %1346
    %v1348 = vsel %vm207, %v1208, 0.0
    %1349 = vadd.xlane.f32.xlu0 %v1348
    %v1350 = vpop.xlane.xlu0 %1349
    %v1351 = vsel %vm207, %v1209, 0.0
    %1352 = vadd.xlane.f32.xlu0 %v1351
    %v1353 = vpop.xlane.xlu0 %1352
    %v1354 = vsel %vm207, %v1210, 0.0
    %1355 = vadd.xlane.f32.xlu0 %v1354
    %v1356 = vpop.xlane.xlu0 %1355
    %v1357 = vsel %vm207, %v1211, 0.0
    %1358 = vadd.xlane.f32.xlu0 %v1357
    %v1359 = vpop.xlane.xlu0 %1358
    %v1360 = vsel %vm207, %v1212, 0.0
    %1361 = vadd.xlane.f32.xlu0 %v1360
    %v1362 = vpop.xlane.xlu0 %1361
    %v1363 = vsel %vm207, %v1213, 0.0
    %1364 = vadd.xlane.f32.xlu0 %v1363
    %v1365 = vpop.xlane.xlu0 %1364
    %v1366 = vsel %vm207, %v1214, 0.0
    %1367 = vadd.xlane.f32.xlu0 %v1366
    %v1368 = vpop.xlane.xlu0 %1367
    %v1369 = vsel %vm207, %v1215, 0.0
    %1370 = vadd.xlane.f32.xlu0 %v1369
    %v1371 = vpop.xlane.xlu0 %1370
    %v1372 = vsel %vm207, %v1216, 0.0
    %1373 = vadd.xlane.f32.xlu0 %v1372
    %v1374 = vpop.xlane.xlu0 %1373
    %v1375 = vsel %vm207, %v1217, 0.0
    %1376 = vadd.xlane.f32.xlu0 %v1375
    %v1377 = vpop.xlane.xlu0 %1376
    %v1378 = vsel %vm207, %v1218, 0.0
    %1379 = vadd.xlane.f32.xlu0 %v1378
    %v1380 = vpop.xlane.xlu0 %1379
    %v1381 = vsel %vm207, %v1219, 0.0
    %1382 = vadd.xlane.f32.xlu0 %v1381
    %v1383 = vpop.xlane.xlu0 %1382
    %v1384 = vsel %vm207, %v1220, 0.0
    %1385 = vadd.xlane.f32.xlu0 %v1384
    %v1386 = vpop.xlane.xlu0 %1385
    %v1387 = vsel %vm207, %v1221, 0.0
    %1388 = vadd.xlane.f32.xlu0 %v1387
    %v1389 = vpop.xlane.xlu0 %1388
    %v1390 = vsel %vm207, %v1222, 0.0
    %1391 = vadd.xlane.f32.xlu0 %v1390
    %v1392 = vpop.xlane.xlu0 %1391
    %v1393 = vsel %vm207, %v1223, 0.0
    %1394 = vadd.xlane.f32.xlu0 %v1393
    %v1395 = vpop.xlane.xlu0 %1394
    %v1396 = vsel %vm207, %v1224, 0.0
    %1397 = vadd.xlane.f32.xlu0 %v1396
    %v1398 = vpop.xlane.xlu0 %1397
    %v1399 = vsel %vm207, %v1225, 0.0
    %1400 = vadd.xlane.f32.xlu0 %v1399
    %v1401 = vpop.xlane.xlu0 %1400
    %v1402 = vsel %vm207, %v1226, 0.0
    %1403 = vadd.xlane.f32.xlu0 %v1402
    %v1404 = vpop.xlane.xlu0 %1403
    %v1405 = vsel %vm207, %v1227, 0.0
    %1406 = vadd.xlane.f32.xlu0 %v1405
    %v1407 = vpop.xlane.xlu0 %1406
    %v1408 = vsel %vm207, %v1228, 0.0
    %1409 = vadd.xlane.f32.xlu0 %v1408
    %v1410 = vpop.xlane.xlu0 %1409
    %v1411 = vsel %vm207, %v1229, 0.0
    %1412 = vadd.xlane.f32.xlu0 %v1411
    %v1413 = vpop.xlane.xlu0 %1412
    %v1414 = vsel %vm207, %v1230, 0.0
    %1415 = vadd.xlane.f32.xlu0 %v1414
    %v1416 = vpop.xlane.xlu0 %1415
    %v1417 = vsel %vm207, %v1231, 0.0
    %1418 = vadd.xlane.f32.xlu0 %v1417
    %v1419 = vpop.xlane.xlu0 %1418
    %v1420 = vsel %vm207, %v1232, 0.0
    %1421 = vadd.xlane.f32.xlu0 %v1420
    %v1422 = vpop.xlane.xlu0 %1421
    %v1423 = vsel %vm207, %v1233, 0.0
    %1424 = vadd.xlane.f32.xlu0 %v1423
    %v1425 = vpop.xlane.xlu0 %1424
    %v1426 = vsub.f32 %v1236, %v785
    %v1427 = vsub.f32 %v1239, %v787
    %v1428 = vsub.f32 %v1242, %v789
    %v1429 = vsub.f32 %v1245, %v791
    %v1430 = vsub.f32 %v1248, %v793
    %v1431 = vsub.f32 %v1251, %v795
    %v1432 = vsub.f32 %v1254, %v797
    %v1433 = vsub.f32 %v1257, %v799
    %v1434 = vsub.f32 %v1260, %v801
    %v1435 = vsub.f32 %v1263, %v803
    %v1436 = vsub.f32 %v1266, %v805
    %v1437 = vsub.f32 %v1269, %v807
    %v1438 = vsub.f32 %v1272, %v809
    %v1439 = vsub.f32 %v1275, %v811
    %v1440 = vsub.f32 %v1278, %v813
    %v1441 = vsub.f32 %v1281, %v815
    %v1442 = vsub.f32 %v1284, %v817
    %v1443 = vsub.f32 %v1287, %v819
    %v1444 = vsub.f32 %v1290, %v821
    %v1445 = vsub.f32 %v1293, %v823
    %v1446 = vsub.f32 %v1296, %v825
    %v1447 = vsub.f32 %v1299, %v827
    %v1448 = vsub.f32 %v1302, %v829
    %v1449 = vsub.f32 %v1305, %v831
    %v1450 = vsub.f32 %v1308, %v833
    %v1451 = vsub.f32 %v1311, %v835
    %v1452 = vsub.f32 %v1314, %v837
    %v1453 = vsub.f32 %v1317, %v839
    %v1454 = vsub.f32 %v1320, %v841
    %v1455 = vsub.f32 %v1323, %v843
    %v1456 = vsub.f32 %v1326, %v845
    %v1457 = vsub.f32 %v1329, %v847
    %v1458 = vsub.f32 %v1332, %v849
    %v1459 = vsub.f32 %v1335, %v851
    %v1460 = vsub.f32 %v1338, %v853
    %v1461 = vsub.f32 %v1341, %v855
    %v1462 = vsub.f32 %v1344, %v857
    %v1463 = vsub.f32 %v1347, %v859
    %v1464 = vsub.f32 %v1350, %v861
    %v1465 = vsub.f32 %v1353, %v863
    %v1466 = vsub.f32 %v1356, %v865
    %v1467 = vsub.f32 %v1359, %v867
    %v1468 = vsub.f32 %v1362, %v869
    %v1469 = vsub.f32 %v1365, %v871
    %v1470 = vsub.f32 %v1368, %v873
    %v1471 = vsub.f32 %v1371, %v875
    %v1472 = vsub.f32 %v1374, %v877
    %v1473 = vsub.f32 %v1377, %v879
    %v1474 = vsub.f32 %v1380, %v881
    %v1475 = vsub.f32 %v1383, %v883
    %v1476 = vsub.f32 %v1386, %v885
    %v1477 = vsub.f32 %v1389, %v887
    %v1478 = vsub.f32 %v1392, %v889
    %v1479 = vsub.f32 %v1395, %v891
    %v1480 = vsub.f32 %v1398, %v893
    %v1481 = vsub.f32 %v1401, %v895
    %v1482 = vsub.f32 %v1404, %v897
    %v1483 = vsub.f32 %v1407, %v899
    %v1484 = vsub.f32 %v1410, %v901
    %v1485 = vsub.f32 %v1413, %v903
    %v1486 = vsub.f32 %v1416, %v905
    %v1487 = vsub.f32 %v1419, %v907
    %v1488 = vsub.f32 %v1422, %v909
    %v1489 = vsub.f32 %v1425, %v911
    %v1490 = vsub.f32 0.0, %v143
    %v1491 = vsub.f32 0.0, %v144
    %v1492 = vsub.f32 0.0, %v145
    %v1493 = vsub.f32 0.0, %v146
    %v1494 = vsub.f32 0.0, %v147
    %v1495 = vsub.f32 0.0, %v148
    %v1496 = vsub.f32 0.0, %v149
    %v1497 = vsub.f32 0.0, %v150
    %v1498 = vsub.f32 0.0, %v151
    %v1499 = vsub.f32 0.0, %v152
    %v1500 = vsub.f32 0.0, %v153
    %v1501 = vsub.f32 0.0, %v154
    %v1502 = vsub.f32 0.0, %v155
    %v1503 = vsub.f32 0.0, %v156
    %v1504 = vsub.f32 0.0, %v157
    %v1505 = vsub.f32 0.0, %v158
    %v1506 = vsub.f32 0.0, %v159
    %v1507 = vsub.f32 0.0, %v160
    %v1508 = vsub.f32 0.0, %v161
    %v1509 = vsub.f32 0.0, %v162
    %v1510 = vsub.f32 0.0, %v163
    %v1511 = vsub.f32 0.0, %v164
    %v1512 = vsub.f32 0.0, %v165
    %v1513 = vsub.f32 0.0, %v166
    %v1514 = vsub.f32 0.0, %v167
    %v1515 = vsub.f32 0.0, %v168
    %v1516 = vsub.f32 0.0, %v169
    %v1517 = vsub.f32 0.0, %v170
    %v1518 = vsub.f32 0.0, %v171
    %v1519 = vsub.f32 0.0, %v172
    %v1520 = vsub.f32 0.0, %v173
    %v1521 = vsub.f32 0.0, %v174
    %v1522 = vsub.f32 0.0, %v175
    %v1523 = vsub.f32 0.0, %v176
    %v1524 = vsub.f32 0.0, %v177
    %v1525 = vsub.f32 0.0, %v178
    %v1526 = vsub.f32 0.0, %v179
    %v1527 = vsub.f32 0.0, %v180
    %v1528 = vsub.f32 0.0, %v181
    %v1529 = vsub.f32 0.0, %v182
    %v1530 = vsub.f32 0.0, %v183
    %v1531 = vsub.f32 0.0, %v184
    %v1532 = vsub.f32 0.0, %v185
    %v1533 = vsub.f32 0.0, %v186
    %v1534 = vsub.f32 0.0, %v187
    %v1535 = vsub.f32 0.0, %v188
    %v1536 = vsub.f32 0.0, %v189
    %v1537 = vsub.f32 0.0, %v190
    %v1538 = vsub.f32 0.0, %v191
    %v1539 = vsub.f32 0.0, %v192
    %v1540 = vsub.f32 0.0, %v193
    %v1541 = vsub.f32 0.0, %v194
    %v1542 = vsub.f32 0.0, %v195
    %v1543 = vsub.f32 0.0, %v196
    %v1544 = vsub.f32 0.0, %v197
    %v1545 = vsub.f32 0.0, %v198
    %v1546 = vsub.f32 0.0, %v199
    %v1547 = vsub.f32 0.0, %v200
    %v1548 = vsub.f32 0.0, %v201
    %v1549 = vsub.f32 0.0, %v202
    %v1550 = vsub.f32 0.0, %v203
    %v1551 = vsub.f32 0.0, %v204
    %v1552 = vsub.f32 0.0, %v205
    %v1553 = vsub.f32 0.0, %v206
    %v1554 = vmul.f32 %v1490, %v1426
    %v1555 = vmul.f32 %v1491, %v1427
    %v1556 = vmul.f32 %v1492, %v1428
    %v1557 = vmul.f32 %v1493, %v1429
    %v1558 = vmul.f32 %v1494, %v1430
    %v1559 = vmul.f32 %v1495, %v1431
    %v1560 = vmul.f32 %v1496, %v1432
    %v1561 = vmul.f32 %v1497, %v1433
    %v1562 = vmul.f32 %v1498, %v1434
    %v1563 = vmul.f32 %v1499, %v1435
    %v1564 = vmul.f32 %v1500, %v1436
    %v1565 = vmul.f32 %v1501, %v1437
    %v1566 = vmul.f32 %v1502, %v1438
    %v1567 = vmul.f32 %v1503, %v1439
    %v1568 = vmul.f32 %v1504, %v1440
    %v1569 = vmul.f32 %v1505, %v1441
    %v1570 = vmul.f32 %v1506, %v1442
    %v1571 = vmul.f32 %v1507, %v1443
    %v1572 = vmul.f32 %v1508, %v1444
    %v1573 = vmul.f32 %v1509, %v1445
    %v1574 = vmul.f32 %v1510, %v1446
    %v1575 = vmul.f32 %v1511, %v1447
    %v1576 = vmul.f32 %v1512, %v1448
    %v1577 = vmul.f32 %v1513, %v1449
    %v1578 = vmul.f32 %v1514, %v1450
    %v1579 = vmul.f32 %v1515, %v1451
    %v1580 = vmul.f32 %v1516, %v1452
    %v1581 = vmul.f32 %v1517, %v1453
    %v1582 = vmul.f32 %v1518, %v1454
    %v1583 = vmul.f32 %v1519, %v1455
    %v1584 = vmul.f32 %v1520, %v1456
    %v1585 = vmul.f32 %v1521, %v1457
    %v1586 = vmul.f32 %v1522, %v1458
    %v1587 = vmul.f32 %v1523, %v1459
    %v1588 = vmul.f32 %v1524, %v1460
    %v1589 = vmul.f32 %v1525, %v1461
    %v1590 = vmul.f32 %v1526, %v1462
    %v1591 = vmul.f32 %v1527, %v1463
    %v1592 = vmul.f32 %v1528, %v1464
    %v1593 = vmul.f32 %v1529, %v1465
    %v1594 = vmul.f32 %v1530, %v1466
    %v1595 = vmul.f32 %v1531, %v1467
    %v1596 = vmul.f32 %v1532, %v1468
    %v1597 = vmul.f32 %v1533, %v1469
    %v1598 = vmul.f32 %v1534, %v1470
    %v1599 = vmul.f32 %v1535, %v1471
    %v1600 = vmul.f32 %v1536, %v1472
    %v1601 = vmul.f32 %v1537, %v1473
    %v1602 = vmul.f32 %v1538, %v1474
    %v1603 = vmul.f32 %v1539, %v1475
    %v1604 = vmul.f32 %v1540, %v1476
    %v1605 = vmul.f32 %v1541, %v1477
    %v1606 = vmul.f32 %v1542, %v1478
    %v1607 = vmul.f32 %v1543, %v1479
    %v1608 = vmul.f32 %v1544, %v1480
    %v1609 = vmul.f32 %v1545, %v1481
    %v1610 = vmul.f32 %v1546, %v1482
    %v1611 = vmul.f32 %v1547, %v1483
    %v1612 = vmul.f32 %v1548, %v1484
    %v1613 = vmul.f32 %v1549, %v1485
    %v1614 = vmul.f32 %v1550, %v1486
    %v1615 = vmul.f32 %v1551, %v1487
    %v1616 = vmul.f32 %v1552, %v1488
    %v1617 = vmul.f32 %v1553, %v1489
    %v1618 = vmul.f32 %v1426, 1.442695
    %v1619 = vpow.pop %v1618
    %v1620 = vmul.f32 %v1427, 1.442695
    %v1621 = vpow.pop %v1620
    %v1622 = vmul.f32 %v1428, 1.442695
    %v1623 = vpow.pop %v1622
    %v1624 = vmul.f32 %v1429, 1.442695
    %v1625 = vpow.pop %v1624
    %v1626 = vmul.f32 %v1430, 1.442695
    %v1627 = vpow.pop %v1626
    %v1628 = vmul.f32 %v1431, 1.442695
    %v1629 = vpow.pop %v1628
    %v1630 = vmul.f32 %v1432, 1.442695
    %v1631 = vpow.pop %v1630
    %v1632 = vmul.f32 %v1433, 1.442695
    %v1633 = vpow.pop %v1632
    %v1634 = vmul.f32 %v1434, 1.442695
    %v1635 = vpow.pop %v1634
    %v1636 = vmul.f32 %v1435, 1.442695
    %v1637 = vpow.pop %v1636
    %v1638 = vmul.f32 %v1436, 1.442695
    %v1639 = vpow.pop %v1638
    %v1640 = vmul.f32 %v1437, 1.442695
    %v1641 = vpow.pop %v1640
    %v1642 = vmul.f32 %v1438, 1.442695
    %v1643 = vpow.pop %v1642
    %v1644 = vmul.f32 %v1439, 1.442695
    %v1645 = vpow.pop %v1644
    %v1646 = vmul.f32 %v1440, 1.442695
    %v1647 = vpow.pop %v1646
    %v1648 = vmul.f32 %v1441, 1.442695
    %v1649 = vpow.pop %v1648
    %v1650 = vmul.f32 %v1442, 1.442695
    %v1651 = vpow.pop %v1650
    %v1652 = vmul.f32 %v1443, 1.442695
    %v1653 = vpow.pop %v1652
    %v1654 = vmul.f32 %v1444, 1.442695
    %v1655 = vpow.pop %v1654
    %v1656 = vmul.f32 %v1445, 1.442695
    %v1657 = vpow.pop %v1656
    %v1658 = vmul.f32 %v1446, 1.442695
    %v1659 = vpow.pop %v1658
    %v1660 = vmul.f32 %v1447, 1.442695
    %v1661 = vpow.pop %v1660
    %v1662 = vmul.f32 %v1448, 1.442695
    %v1663 = vpow.pop %v1662
    %v1664 = vmul.f32 %v1449, 1.442695
    %v1665 = vpow.pop %v1664
    %v1666 = vmul.f32 %v1450, 1.442695
    %v1667 = vpow.pop %v1666
    %v1668 = vmul.f32 %v1451, 1.442695
    %v1669 = vpow.pop %v1668
    %v1670 = vmul.f32 %v1452, 1.442695
    %v1671 = vpow.pop %v1670
    %v1672 = vmul.f32 %v1453, 1.442695
    %v1673 = vpow.pop %v1672
    %v1674 = vmul.f32 %v1454, 1.442695
    %v1675 = vpow.pop %v1674
    %v1676 = vmul.f32 %v1455, 1.442695
    %v1677 = vpow.pop %v1676
    %v1678 = vmul.f32 %v1456, 1.442695
    %v1679 = vpow.pop %v1678
    %v1680 = vmul.f32 %v1457, 1.442695
    %v1681 = vpow.pop %v1680
    %v1682 = vmul.f32 %v1458, 1.442695
    %v1683 = vpow.pop %v1682
    %v1684 = vmul.f32 %v1459, 1.442695
    %v1685 = vpow.pop %v1684
    %v1686 = vmul.f32 %v1460, 1.442695
    %v1687 = vpow.pop %v1686
    %v1688 = vmul.f32 %v1461, 1.442695
    %v1689 = vpow.pop %v1688
    %v1690 = vmul.f32 %v1462, 1.442695
    %v1691 = vpow.pop %v1690
    %v1692 = vmul.f32 %v1463, 1.442695
    %v1693 = vpow.pop %v1692
    %v1694 = vmul.f32 %v1464, 1.442695
    %v1695 = vpow.pop %v1694
    %v1696 = vmul.f32 %v1465, 1.442695
    %v1697 = vpow.pop %v1696
    %v1698 = vmul.f32 %v1466, 1.442695
    %v1699 = vpow.pop %v1698
    %v1700 = vmul.f32 %v1467, 1.442695
    %v1701 = vpow.pop %v1700
    %v1702 = vmul.f32 %v1468, 1.442695
    %v1703 = vpow.pop %v1702
    %v1704 = vmul.f32 %v1469, 1.442695
    %v1705 = vpow.pop %v1704
    %v1706 = vmul.f32 %v1470, 1.442695
    %v1707 = vpow.pop %v1706
    %v1708 = vmul.f32 %v1471, 1.442695
    %v1709 = vpow.pop %v1708
    %v1710 = vmul.f32 %v1472, 1.442695
    %v1711 = vpow.pop %v1710
    %v1712 = vmul.f32 %v1473, 1.442695
    %v1713 = vpow.pop %v1712
    %v1714 = vmul.f32 %v1474, 1.442695
    %v1715 = vpow.pop %v1714
    %v1716 = vmul.f32 %v1475, 1.442695
    %v1717 = vpow.pop %v1716
    %v1718 = vmul.f32 %v1476, 1.442695
    %v1719 = vpow.pop %v1718
    %v1720 = vmul.f32 %v1477, 1.442695
    %v1721 = vpow.pop %v1720
    %v1722 = vmul.f32 %v1478, 1.442695
    %v1723 = vpow.pop %v1722
    %v1724 = vmul.f32 %v1479, 1.442695
    %v1725 = vpow.pop %v1724
    %v1726 = vmul.f32 %v1480, 1.442695
    %v1727 = vpow.pop %v1726
    %v1728 = vmul.f32 %v1481, 1.442695
    %v1729 = vpow.pop %v1728
    %v1730 = vmul.f32 %v1482, 1.442695
    %v1731 = vpow.pop %v1730
    %v1732 = vmul.f32 %v1483, 1.442695
    %v1733 = vpow.pop %v1732
    %v1734 = vmul.f32 %v1484, 1.442695
    %v1735 = vpow.pop %v1734
    %v1736 = vmul.f32 %v1485, 1.442695
    %v1737 = vpow.pop %v1736
    %v1738 = vmul.f32 %v1486, 1.442695
    %v1739 = vpow.pop %v1738
    %v1740 = vmul.f32 %v1487, 1.442695
    %v1741 = vpow.pop %v1740
    %v1742 = vmul.f32 %v1488, 1.442695
    %v1743 = vpow.pop %v1742
    %v1744 = vmul.f32 %v1489, 1.442695
    %v1745 = vpow.pop %v1744
    %v1746 = vsub.f32 1.0, %v1619
    %v1747 = vsub.f32 1.0, %v1621
    %v1748 = vsub.f32 1.0, %v1623
    %v1749 = vsub.f32 1.0, %v1625
    %v1750 = vsub.f32 1.0, %v1627
    %v1751 = vsub.f32 1.0, %v1629
    %v1752 = vsub.f32 1.0, %v1631
    %v1753 = vsub.f32 1.0, %v1633
    %v1754 = vsub.f32 1.0, %v1635
    %v1755 = vsub.f32 1.0, %v1637
    %v1756 = vsub.f32 1.0, %v1639
    %v1757 = vsub.f32 1.0, %v1641
    %v1758 = vsub.f32 1.0, %v1643
    %v1759 = vsub.f32 1.0, %v1645
    %v1760 = vsub.f32 1.0, %v1647
    %v1761 = vsub.f32 1.0, %v1649
    %v1762 = vsub.f32 1.0, %v1651
    %v1763 = vsub.f32 1.0, %v1653
    %v1764 = vsub.f32 1.0, %v1655
    %v1765 = vsub.f32 1.0, %v1657
    %v1766 = vsub.f32 1.0, %v1659
    %v1767 = vsub.f32 1.0, %v1661
    %v1768 = vsub.f32 1.0, %v1663
    %v1769 = vsub.f32 1.0, %v1665
    %v1770 = vsub.f32 1.0, %v1667
    %v1771 = vsub.f32 1.0, %v1669
    %v1772 = vsub.f32 1.0, %v1671
    %v1773 = vsub.f32 1.0, %v1673
    %v1774 = vsub.f32 1.0, %v1675
    %v1775 = vsub.f32 1.0, %v1677
    %v1776 = vsub.f32 1.0, %v1679
    %v1777 = vsub.f32 1.0, %v1681
    %v1778 = vsub.f32 1.0, %v1683
    %v1779 = vsub.f32 1.0, %v1685
    %v1780 = vsub.f32 1.0, %v1687
    %v1781 = vsub.f32 1.0, %v1689
    %v1782 = vsub.f32 1.0, %v1691
    %v1783 = vsub.f32 1.0, %v1693
    %v1784 = vsub.f32 1.0, %v1695
    %v1785 = vsub.f32 1.0, %v1697
    %v1786 = vsub.f32 1.0, %v1699
    %v1787 = vsub.f32 1.0, %v1701
    %v1788 = vsub.f32 1.0, %v1703
    %v1789 = vsub.f32 1.0, %v1705
    %v1790 = vsub.f32 1.0, %v1707
    %v1791 = vsub.f32 1.0, %v1709
    %v1792 = vsub.f32 1.0, %v1711
    %v1793 = vsub.f32 1.0, %v1713
    %v1794 = vsub.f32 1.0, %v1715
    %v1795 = vsub.f32 1.0, %v1717
    %v1796 = vsub.f32 1.0, %v1719
    %v1797 = vsub.f32 1.0, %v1721
    %v1798 = vsub.f32 1.0, %v1723
    %v1799 = vsub.f32 1.0, %v1725
    %v1800 = vsub.f32 1.0, %v1727
    %v1801 = vsub.f32 1.0, %v1729
    %v1802 = vsub.f32 1.0, %v1731
    %v1803 = vsub.f32 1.0, %v1733
    %v1804 = vsub.f32 1.0, %v1735
    %v1805 = vsub.f32 1.0, %v1737
    %v1806 = vsub.f32 1.0, %v1739
    %v1807 = vsub.f32 1.0, %v1741
    %v1808 = vsub.f32 1.0, %v1743
    %v1809 = vsub.f32 1.0, %v1745
    %v1810 = vmax.f32 %v1746, 0.0
    %v1811 = vmax.f32 %v1747, 0.0
    %v1812 = vmax.f32 %v1748, 0.0
    %v1813 = vmax.f32 %v1749, 0.0
    %v1814 = vmax.f32 %v1750, 0.0
    %v1815 = vmax.f32 %v1751, 0.0
    %v1816 = vmax.f32 %v1752, 0.0
    %v1817 = vmax.f32 %v1753, 0.0
    %v1818 = vmax.f32 %v1754, 0.0
    %v1819 = vmax.f32 %v1755, 0.0
    %v1820 = vmax.f32 %v1756, 0.0
    %v1821 = vmax.f32 %v1757, 0.0
    %v1822 = vmax.f32 %v1758, 0.0
    %v1823 = vmax.f32 %v1759, 0.0
    %v1824 = vmax.f32 %v1760, 0.0
    %v1825 = vmax.f32 %v1761, 0.0
    %v1826 = vmax.f32 %v1762, 0.0
    %v1827 = vmax.f32 %v1763, 0.0
    %v1828 = vmax.f32 %v1764, 0.0
    %v1829 = vmax.f32 %v1765, 0.0
    %v1830 = vmax.f32 %v1766, 0.0
    %v1831 = vmax.f32 %v1767, 0.0
    %v1832 = vmax.f32 %v1768, 0.0
    %v1833 = vmax.f32 %v1769, 0.0
    %v1834 = vmax.f32 %v1770, 0.0
    %v1835 = vmax.f32 %v1771, 0.0
    %v1836 = vmax.f32 %v1772, 0.0
    %v1837 = vmax.f32 %v1773, 0.0
    %v1838 = vmax.f32 %v1774, 0.0
    %v1839 = vmax.f32 %v1775, 0.0
    %v1840 = vmax.f32 %v1776, 0.0
    %v1841 = vmax.f32 %v1777, 0.0
    %v1842 = vmax.f32 %v1778, 0.0
    %v1843 = vmax.f32 %v1779, 0.0
    %v1844 = vmax.f32 %v1780, 0.0
    %v1845 = vmax.f32 %v1781, 0.0
    %v1846 = vmax.f32 %v1782, 0.0
    %v1847 = vmax.f32 %v1783, 0.0
    %v1848 = vmax.f32 %v1784, 0.0
    %v1849 = vmax.f32 %v1785, 0.0
    %v1850 = vmax.f32 %v1786, 0.0
    %v1851 = vmax.f32 %v1787, 0.0
    %v1852 = vmax.f32 %v1788, 0.0
    %v1853 = vmax.f32 %v1789, 0.0
    %v1854 = vmax.f32 %v1790, 0.0
    %v1855 = vmax.f32 %v1791, 0.0
    %v1856 = vmax.f32 %v1792, 0.0
    %v1857 = vmax.f32 %v1793, 0.0
    %v1858 = vmax.f32 %v1794, 0.0
    %v1859 = vmax.f32 %v1795, 0.0
    %v1860 = vmax.f32 %v1796, 0.0
    %v1861 = vmax.f32 %v1797, 0.0
    %v1862 = vmax.f32 %v1798, 0.0
    %v1863 = vmax.f32 %v1799, 0.0
    %v1864 = vmax.f32 %v1800, 0.0
    %v1865 = vmax.f32 %v1801, 0.0
    %v1866 = vmax.f32 %v1802, 0.0
    %v1867 = vmax.f32 %v1803, 0.0
    %v1868 = vmax.f32 %v1804, 0.0
    %v1869 = vmax.f32 %v1805, 0.0
    %v1870 = vmax.f32 %v1806, 0.0
    %v1871 = vmax.f32 %v1807, 0.0
    %v1872 = vmax.f32 %v1808, 0.0
    %v1873 = vmax.f32 %v1809, 0.0
    %v1874 = vmul.f32 %v1810, %v1810
    %v1875 = vmul.f32 %v1811, %v1811
    %v1876 = vmul.f32 %v1812, %v1812
    %v1877 = vmul.f32 %v1813, %v1813
    %v1878 = vmul.f32 %v1814, %v1814
    %v1879 = vmul.f32 %v1815, %v1815
    %v1880 = vmul.f32 %v1816, %v1816
    %v1881 = vmul.f32 %v1817, %v1817
    %v1882 = vmul.f32 %v1818, %v1818
    %v1883 = vmul.f32 %v1819, %v1819
    %v1884 = vmul.f32 %v1820, %v1820
    %v1885 = vmul.f32 %v1821, %v1821
    %v1886 = vmul.f32 %v1822, %v1822
    %v1887 = vmul.f32 %v1823, %v1823
    %v1888 = vmul.f32 %v1824, %v1824
    %v1889 = vmul.f32 %v1825, %v1825
    %v1890 = vmul.f32 %v1826, %v1826
    %v1891 = vmul.f32 %v1827, %v1827
    %v1892 = vmul.f32 %v1828, %v1828
    %v1893 = vmul.f32 %v1829, %v1829
    %v1894 = vmul.f32 %v1830, %v1830
    %v1895 = vmul.f32 %v1831, %v1831
    %v1896 = vmul.f32 %v1832, %v1832
    %v1897 = vmul.f32 %v1833, %v1833
    %v1898 = vmul.f32 %v1834, %v1834
    %v1899 = vmul.f32 %v1835, %v1835
    %v1900 = vmul.f32 %v1836, %v1836
    %v1901 = vmul.f32 %v1837, %v1837
    %v1902 = vmul.f32 %v1838, %v1838
    %v1903 = vmul.f32 %v1839, %v1839
    %v1904 = vmul.f32 %v1840, %v1840
    %v1905 = vmul.f32 %v1841, %v1841
    %v1906 = vmul.f32 %v1842, %v1842
    %v1907 = vmul.f32 %v1843, %v1843
    %v1908 = vmul.f32 %v1844, %v1844
    %v1909 = vmul.f32 %v1845, %v1845
    %v1910 = vmul.f32 %v1846, %v1846
    %v1911 = vmul.f32 %v1847, %v1847
    %v1912 = vmul.f32 %v1848, %v1848
    %v1913 = vmul.f32 %v1849, %v1849
    %v1914 = vmul.f32 %v1850, %v1850
    %v1915 = vmul.f32 %v1851, %v1851
    %v1916 = vmul.f32 %v1852, %v1852
    %v1917 = vmul.f32 %v1853, %v1853
    %v1918 = vmul.f32 %v1854, %v1854
    %v1919 = vmul.f32 %v1855, %v1855
    %v1920 = vmul.f32 %v1856, %v1856
    %v1921 = vmul.f32 %v1857, %v1857
    %v1922 = vmul.f32 %v1858, %v1858
    %v1923 = vmul.f32 %v1859, %v1859
    %v1924 = vmul.f32 %v1860, %v1860
    %v1925 = vmul.f32 %v1861, %v1861
    %v1926 = vmul.f32 %v1862, %v1862
    %v1927 = vmul.f32 %v1863, %v1863
    %v1928 = vmul.f32 %v1864, %v1864
    %v1929 = vmul.f32 %v1865, %v1865
    %v1930 = vmul.f32 %v1866, %v1866
    %v1931 = vmul.f32 %v1867, %v1867
    %v1932 = vmul.f32 %v1868, %v1868
    %v1933 = vmul.f32 %v1869, %v1869
    %v1934 = vmul.f32 %v1870, %v1870
    %v1935 = vmul.f32 %v1871, %v1871
    %v1936 = vmul.f32 %v1872, %v1872
    %v1937 = vmul.f32 %v1873, %v1873
    %v1938 = vmul.f32 %v1874, %v1554
    %v1939 = vmul.f32 %v1875, %v1555
    %v1940 = vmul.f32 %v1876, %v1556
    %v1941 = vmul.f32 %v1877, %v1557
    %v1942 = vmul.f32 %v1878, %v1558
    %v1943 = vmul.f32 %v1879, %v1559
    %v1944 = vmul.f32 %v1880, %v1560
    %v1945 = vmul.f32 %v1881, %v1561
    %v1946 = vmul.f32 %v1882, %v1562
    %v1947 = vmul.f32 %v1883, %v1563
    %v1948 = vmul.f32 %v1884, %v1564
    %v1949 = vmul.f32 %v1885, %v1565
    %v1950 = vmul.f32 %v1886, %v1566
    %v1951 = vmul.f32 %v1887, %v1567
    %v1952 = vmul.f32 %v1888, %v1568
    %v1953 = vmul.f32 %v1889, %v1569
    %v1954 = vmul.f32 %v1890, %v1570
    %v1955 = vmul.f32 %v1891, %v1571
    %v1956 = vmul.f32 %v1892, %v1572
    %v1957 = vmul.f32 %v1893, %v1573
    %v1958 = vmul.f32 %v1894, %v1574
    %v1959 = vmul.f32 %v1895, %v1575
    %v1960 = vmul.f32 %v1896, %v1576
    %v1961 = vmul.f32 %v1897, %v1577
    %v1962 = vmul.f32 %v1898, %v1578
    %v1963 = vmul.f32 %v1899, %v1579
    %v1964 = vmul.f32 %v1900, %v1580
    %v1965 = vmul.f32 %v1901, %v1581
    %v1966 = vmul.f32 %v1902, %v1582
    %v1967 = vmul.f32 %v1903, %v1583
    %v1968 = vmul.f32 %v1904, %v1584
    %v1969 = vmul.f32 %v1905, %v1585
    %v1970 = vmul.f32 %v1906, %v1586
    %v1971 = vmul.f32 %v1907, %v1587
    %v1972 = vmul.f32 %v1908, %v1588
    %v1973 = vmul.f32 %v1909, %v1589
    %v1974 = vmul.f32 %v1910, %v1590
    %v1975 = vmul.f32 %v1911, %v1591
    %v1976 = vmul.f32 %v1912, %v1592
    %v1977 = vmul.f32 %v1913, %v1593
    %v1978 = vmul.f32 %v1914, %v1594
    %v1979 = vmul.f32 %v1915, %v1595
    %v1980 = vmul.f32 %v1916, %v1596
    %v1981 = vmul.f32 %v1917, %v1597
    %v1982 = vmul.f32 %v1918, %v1598
    %v1983 = vmul.f32 %v1919, %v1599
    %v1984 = vmul.f32 %v1920, %v1600
    %v1985 = vmul.f32 %v1921, %v1601
    %v1986 = vmul.f32 %v1922, %v1602
    %v1987 = vmul.f32 %v1923, %v1603
    %v1988 = vmul.f32 %v1924, %v1604
    %v1989 = vmul.f32 %v1925, %v1605
    %v1990 = vmul.f32 %v1926, %v1606
    %v1991 = vmul.f32 %v1927, %v1607
    %v1992 = vmul.f32 %v1928, %v1608
    %v1993 = vmul.f32 %v1929, %v1609
    %v1994 = vmul.f32 %v1930, %v1610
    %v1995 = vmul.f32 %v1931, %v1611
    %v1996 = vmul.f32 %v1932, %v1612
    %v1997 = vmul.f32 %v1933, %v1613
    %v1998 = vmul.f32 %v1934, %v1614
    %v1999 = vmul.f32 %v1935, %v1615
    %v2000 = vmul.f32 %v1936, %v1616
    %v2001 = vmul.f32 %v1937, %v1617
    %v2002 = vlaneseq
    %v2003 = vshrl.u32 %v2002, 7
    %v2004 = vadd.s32 %v2003, 8
    %v2005 = vadd.s32 %v2003, 16
    %v2006 = vadd.s32 %v2003, 24
    %v2007 = vadd.s32 %v2003, 32
    %v2008 = vadd.s32 %v2003, 40
    %v2009 = vadd.s32 %v2003, 48
    %v2010 = vadd.s32 %v2003, 56
    %v2011 = vadd.s32 %v2003, 64
    %v2012 = vadd.s32 %v2003, 72
    %v2013 = vadd.s32 %v2003, 80
    %v2014 = vadd.s32 %v2003, 88
    %v2015 = vadd.s32 %v2003, 96
    %v2016 = vadd.s32 %v2003, 104
    %v2017 = vadd.s32 %v2003, 112
    %v2018 = vadd.s32 %v2003, 120
    %v2019 = vadd.s32 %v2003, 128
    %v2020 = vadd.s32 %v2003, 136
    %v2021 = vadd.s32 %v2003, 144
    %v2022 = vadd.s32 %v2003, 152
    %v2023 = vadd.s32 %v2003, 160
    %v2024 = vadd.s32 %v2003, 168
    %v2025 = vadd.s32 %v2003, 176
    %v2026 = vadd.s32 %v2003, 184
    %v2027 = vadd.s32 %v2003, 192
    %v2028 = vadd.s32 %v2003, 200
    %v2029 = vadd.s32 %v2003, 208
    %v2030 = vadd.s32 %v2003, 216
    %v2031 = vadd.s32 %v2003, 224
    %v2032 = vadd.s32 %v2003, 232
    %v2033 = vadd.s32 %v2003, 240
    %v2034 = vadd.s32 %v2003, 248
    %v2035 = vadd.s32 %v2003, 256
    %v2036 = vadd.s32 %v2003, 264
    %v2037 = vadd.s32 %v2003, 272
    %v2038 = vadd.s32 %v2003, 280
    %v2039 = vadd.s32 %v2003, 288
    %v2040 = vadd.s32 %v2003, 296
    %v2041 = vadd.s32 %v2003, 304
    %v2042 = vadd.s32 %v2003, 312
    %v2043 = vadd.s32 %v2003, 320
    %v2044 = vadd.s32 %v2003, 328
    %v2045 = vadd.s32 %v2003, 336
    %v2046 = vadd.s32 %v2003, 344
    %v2047 = vadd.s32 %v2003, 352
    %v2048 = vadd.s32 %v2003, 360
    %v2049 = vadd.s32 %v2003, 368
    %v2050 = vadd.s32 %v2003, 376
    %v2051 = vadd.s32 %v2003, 384
    %v2052 = vadd.s32 %v2003, 392
    %v2053 = vadd.s32 %v2003, 400
    %v2054 = vadd.s32 %v2003, 408
    %v2055 = vadd.s32 %v2003, 416
    %v2056 = vadd.s32 %v2003, 424
    %v2057 = vadd.s32 %v2003, 432
    %v2058 = vadd.s32 %v2003, 440
    %v2059 = vadd.s32 %v2003, 448
    %v2060 = vadd.s32 %v2003, 456
    %v2061 = vadd.s32 %v2003, 464
    %v2062 = vadd.s32 %v2003, 472
    %v2063 = vadd.s32 %v2003, 480
    %v2064 = vadd.s32 %v2003, 488
    %v2065 = vadd.s32 %v2003, 496
    %v2066 = vadd.s32 %v2003, 504
    %s2067 = smul.u32 0, 512
    %v2068 = vstv %s2067
    %v2069 = vadd.s32 %v2003, %v2068
    %v2070 = vadd.s32 %v2004, %v2068
    %v2071 = vadd.s32 %v2005, %v2068
    %v2072 = vadd.s32 %v2006, %v2068
    %v2073 = vadd.s32 %v2007, %v2068
    %v2074 = vadd.s32 %v2008, %v2068
    %v2075 = vadd.s32 %v2009, %v2068
    %v2076 = vadd.s32 %v2010, %v2068
    %v2077 = vadd.s32 %v2011, %v2068
    %v2078 = vadd.s32 %v2012, %v2068
    %v2079 = vadd.s32 %v2013, %v2068
    %v2080 = vadd.s32 %v2014, %v2068
    %v2081 = vadd.s32 %v2015, %v2068
    %v2082 = vadd.s32 %v2016, %v2068
    %v2083 = vadd.s32 %v2017, %v2068
    %v2084 = vadd.s32 %v2018, %v2068
    %v2085 = vadd.s32 %v2019, %v2068
    %v2086 = vadd.s32 %v2020, %v2068
    %v2087 = vadd.s32 %v2021, %v2068
    %v2088 = vadd.s32 %v2022, %v2068
    %v2089 = vadd.s32 %v2023, %v2068
    %v2090 = vadd.s32 %v2024, %v2068
    %v2091 = vadd.s32 %v2025, %v2068
    %v2092 = vadd.s32 %v2026, %v2068
    %v2093 = vadd.s32 %v2027, %v2068
    %v2094 = vadd.s32 %v2028, %v2068
    %v2095 = vadd.s32 %v2029, %v2068
    %v2096 = vadd.s32 %v2030, %v2068
    %v2097 = vadd.s32 %v2031, %v2068
    %v2098 = vadd.s32 %v2032, %v2068
    %v2099 = vadd.s32 %v2033, %v2068
    %v2100 = vadd.s32 %v2034, %v2068
    %v2101 = vadd.s32 %v2035, %v2068
    %v2102 = vadd.s32 %v2036, %v2068
    %v2103 = vadd.s32 %v2037, %v2068
    %v2104 = vadd.s32 %v2038, %v2068
    %v2105 = vadd.s32 %v2039, %v2068
    %v2106 = vadd.s32 %v2040, %v2068
    %v2107 = vadd.s32 %v2041, %v2068
    %v2108 = vadd.s32 %v2042, %v2068
    %v2109 = vadd.s32 %v2043, %v2068
    %v2110 = vadd.s32 %v2044, %v2068
    %v2111 = vadd.s32 %v2045, %v2068
    %v2112 = vadd.s32 %v2046, %v2068
    %v2113 = vadd.s32 %v2047, %v2068
    %v2114 = vadd.s32 %v2048, %v2068
    %v2115 = vadd.s32 %v2049, %v2068
    %v2116 = vadd.s32 %v2050, %v2068
    %v2117 = vadd.s32 %v2051, %v2068
    %v2118 = vadd.s32 %v2052, %v2068
    %v2119 = vadd.s32 %v2053, %v2068
    %v2120 = vadd.s32 %v2054, %v2068
    %v2121 = vadd.s32 %v2055, %v2068
    %v2122 = vadd.s32 %v2056, %v2068
    %v2123 = vadd.s32 %v2057, %v2068
    %v2124 = vadd.s32 %v2058, %v2068
    %v2125 = vadd.s32 %v2059, %v2068
    %v2126 = vadd.s32 %v2060, %v2068
    %v2127 = vadd.s32 %v2061, %v2068
    %v2128 = vadd.s32 %v2062, %v2068
    %v2129 = vadd.s32 %v2063, %v2068
    %v2130 = vadd.s32 %v2064, %v2068
    %v2131 = vadd.s32 %v2065, %v2068
    %v2132 = vadd.s32 %v2066, %v2068
    %vm2133 = vcmp.ne.s32.totalorder %v79, 4294967196
    %vm2134 = vcmp.ne.s32.totalorder %v80, 4294967196
    %vm2135 = vcmp.ne.s32.totalorder %v81, 4294967196
    %vm2136 = vcmp.ne.s32.totalorder %v82, 4294967196
    %vm2137 = vcmp.ne.s32.totalorder %v83, 4294967196
    %vm2138 = vcmp.ne.s32.totalorder %v84, 4294967196
    %vm2139 = vcmp.ne.s32.totalorder %v85, 4294967196
    %vm2140 = vcmp.ne.s32.totalorder %v86, 4294967196
    %vm2141 = vcmp.ne.s32.totalorder %v87, 4294967196
    %vm2142 = vcmp.ne.s32.totalorder %v88, 4294967196
    %vm2143 = vcmp.ne.s32.totalorder %v89, 4294967196
    %vm2144 = vcmp.ne.s32.totalorder %v90, 4294967196
    %vm2145 = vcmp.ne.s32.totalorder %v91, 4294967196
    %vm2146 = vcmp.ne.s32.totalorder %v92, 4294967196
    %vm2147 = vcmp.ne.s32.totalorder %v93, 4294967196
    %vm2148 = vcmp.ne.s32.totalorder %v94, 4294967196
    %vm2149 = vcmp.ne.s32.totalorder %v95, 4294967196
    %vm2150 = vcmp.ne.s32.totalorder %v96, 4294967196
    %vm2151 = vcmp.ne.s32.totalorder %v97, 4294967196
    %vm2152 = vcmp.ne.s32.totalorder %v98, 4294967196
    %vm2153 = vcmp.ne.s32.totalorder %v99, 4294967196
    %vm2154 = vcmp.ne.s32.totalorder %v100, 4294967196
    %vm2155 = vcmp.ne.s32.totalorder %v101, 4294967196
    %vm2156 = vcmp.ne.s32.totalorder %v102, 4294967196
    %vm2157 = vcmp.ne.s32.totalorder %v103, 4294967196
    %vm2158 = vcmp.ne.s32.totalorder %v104, 4294967196
    %vm2159 = vcmp.ne.s32.totalorder %v105, 4294967196
    %vm2160 = vcmp.ne.s32.totalorder %v106, 4294967196
    %vm2161 = vcmp.ne.s32.totalorder %v107, 4294967196
    %vm2162 = vcmp.ne.s32.totalorder %v108, 4294967196
    %vm2163 = vcmp.ne.s32.totalorder %v109, 4294967196
    %vm2164 = vcmp.ne.s32.totalorder %v110, 4294967196
    %vm2165 = vcmp.ne.s32.totalorder %v111, 4294967196
    %vm2166 = vcmp.ne.s32.totalorder %v112, 4294967196
    %vm2167 = vcmp.ne.s32.totalorder %v113, 4294967196
    %vm2168 = vcmp.ne.s32.totalorder %v114, 4294967196
    %vm2169 = vcmp.ne.s32.totalorder %v115, 4294967196
    %vm2170 = vcmp.ne.s32.totalorder %v116, 4294967196
    %vm2171 = vcmp.ne.s32.totalorder %v117, 4294967196
    %vm2172 = vcmp.ne.s32.totalorder %v118, 4294967196
    %vm2173 = vcmp.ne.s32.totalorder %v119, 4294967196
    %vm2174 = vcmp.ne.s32.totalorder %v120, 4294967196
    %vm2175 = vcmp.ne.s32.totalorder %v121, 4294967196
    %vm2176 = vcmp.ne.s32.totalorder %v122, 4294967196
    %vm2177 = vcmp.ne.s32.totalorder %v123, 4294967196
    %vm2178 = vcmp.ne.s32.totalorder %v124, 4294967196
    %vm2179 = vcmp.ne.s32.totalorder %v125, 4294967196
    %vm2180 = vcmp.ne.s32.totalorder %v126, 4294967196
    %vm2181 = vcmp.ne.s32.totalorder %v127, 4294967196
    %vm2182 = vcmp.ne.s32.totalorder %v128, 4294967196
    %vm2183 = vcmp.ne.s32.totalorder %v129, 4294967196
    %vm2184 = vcmp.ne.s32.totalorder %v130, 4294967196
    %vm2185 = vcmp.ne.s32.totalorder %v131, 4294967196
    %vm2186 = vcmp.ne.s32.totalorder %v132, 4294967196
    %vm2187 = vcmp.ne.s32.totalorder %v133, 4294967196
    %vm2188 = vcmp.ne.s32.totalorder %v134, 4294967196
    %vm2189 = vcmp.ne.s32.totalorder %v135, 4294967196
    %vm2190 = vcmp.ne.s32.totalorder %v136, 4294967196
    %vm2191 = vcmp.ne.s32.totalorder %v137, 4294967196
    %vm2192 = vcmp.ne.s32.totalorder %v138, 4294967196
    %vm2193 = vcmp.ne.s32.totalorder %v139, 4294967196
    %vm2194 = vcmp.ne.s32.totalorder %v140, 4294967196
    %vm2195 = vcmp.ne.s32.totalorder %v141, 4294967196
    %vm2196 = vcmp.ne.s32.totalorder %v142, 4294967196
    %vm2197 = vcmp.lt.s32.totalorder %v2069, 512
    %vm2198 = vcmp.lt.s32.totalorder %v2070, 512
    %vm2199 = vcmp.lt.s32.totalorder %v2071, 512
    %vm2200 = vcmp.lt.s32.totalorder %v2072, 512
    %vm2201 = vcmp.lt.s32.totalorder %v2073, 512
    %vm2202 = vcmp.lt.s32.totalorder %v2074, 512
    %vm2203 = vcmp.lt.s32.totalorder %v2075, 512
    %vm2204 = vcmp.lt.s32.totalorder %v2076, 512
    %vm2205 = vcmp.lt.s32.totalorder %v2077, 512
    %vm2206 = vcmp.lt.s32.totalorder %v2078, 512
    %vm2207 = vcmp.lt.s32.totalorder %v2079, 512
    %vm2208 = vcmp.lt.s32.totalorder %v2080, 512
    %vm2209 = vcmp.lt.s32.totalorder %v2081, 512
    %vm2210 = vcmp.lt.s32.totalorder %v2082, 512
    %vm2211 = vcmp.lt.s32.totalorder %v2083, 512
    %vm2212 = vcmp.lt.s32.totalorder %v2084, 512
    %vm2213 = vcmp.lt.s32.totalorder %v2085, 512
    %vm2214 = vcmp.lt.s32.totalorder %v2086, 512
    %vm2215 = vcmp.lt.s32.totalorder %v2087, 512
    %vm2216 = vcmp.lt.s32.totalorder %v2088, 512
    %vm2217 = vcmp.lt.s32.totalorder %v2089, 512
    %vm2218 = vcmp.lt.s32.totalorder %v2090, 512
    %vm2219 = vcmp.lt.s32.totalorder %v2091, 512
    %vm2220 = vcmp.lt.s32.totalorder %v2092, 512
    %vm2221 = vcmp.lt.s32.totalorder %v2093, 512
    %vm2222 = vcmp.lt.s32.totalorder %v2094, 512
    %vm2223 = vcmp.lt.s32.totalorder %v2095, 512
    %vm2224 = vcmp.lt.s32.totalorder %v2096, 512
    %vm2225 = vcmp.lt.s32.totalorder %v2097, 512
    %vm2226 = vcmp.lt.s32.totalorder %v2098, 512
    %vm2227 = vcmp.lt.s32.totalorder %v2099, 512
    %vm2228 = vcmp.lt.s32.totalorder %v2100, 512
    %vm2229 = vcmp.lt.s32.totalorder %v2101, 512
    %vm2230 = vcmp.lt.s32.totalorder %v2102, 512
    %vm2231 = vcmp.lt.s32.totalorder %v2103, 512
    %vm2232 = vcmp.lt.s32.totalorder %v2104, 512
    %vm2233 = vcmp.lt.s32.totalorder %v2105, 512
    %vm2234 = vcmp.lt.s32.totalorder %v2106, 512
    %vm2235 = vcmp.lt.s32.totalorder %v2107, 512
    %vm2236 = vcmp.lt.s32.totalorder %v2108, 512
    %vm2237 = vcmp.lt.s32.totalorder %v2109, 512
    %vm2238 = vcmp.lt.s32.totalorder %v2110, 512
    %vm2239 = vcmp.lt.s32.totalorder %v2111, 512
    %vm2240 = vcmp.lt.s32.totalorder %v2112, 512
    %vm2241 = vcmp.lt.s32.totalorder %v2113, 512
    %vm2242 = vcmp.lt.s32.totalorder %v2114, 512
    %vm2243 = vcmp.lt.s32.totalorder %v2115, 512
    %vm2244 = vcmp.lt.s32.totalorder %v2116, 512
    %vm2245 = vcmp.lt.s32.totalorder %v2117, 512
    %vm2246 = vcmp.lt.s32.totalorder %v2118, 512
    %vm2247 = vcmp.lt.s32.totalorder %v2119, 512
    %vm2248 = vcmp.lt.s32.totalorder %v2120, 512
    %vm2249 = vcmp.lt.s32.totalorder %v2121, 512
    %vm2250 = vcmp.lt.s32.totalorder %v2122, 512
    %vm2251 = vcmp.lt.s32.totalorder %v2123, 512
    %vm2252 = vcmp.lt.s32.totalorder %v2124, 512
    %vm2253 = vcmp.lt.s32.totalorder %v2125, 512
    %vm2254 = vcmp.lt.s32.totalorder %v2126, 512
    %vm2255 = vcmp.lt.s32.totalorder %v2127, 512
    %vm2256 = vcmp.lt.s32.totalorder %v2128, 512
    %vm2257 = vcmp.lt.s32.totalorder %v2129, 512
    %vm2258 = vcmp.lt.s32.totalorder %v2130, 512
    %vm2259 = vcmp.lt.s32.totalorder %v2131, 512
    %vm2260 = vcmp.lt.s32.totalorder %v2132, 512
    %vm2261 = vmand %vm2133, %vm2197
    %vm2262 = vmand %vm2134, %vm2198
    %vm2263 = vmand %vm2135, %vm2199
    %vm2264 = vmand %vm2136, %vm2200
    %vm2265 = vmand %vm2137, %vm2201
    %vm2266 = vmand %vm2138, %vm2202
    %vm2267 = vmand %vm2139, %vm2203
    %vm2268 = vmand %vm2140, %vm2204
    %vm2269 = vmand %vm2141, %vm2205
    %vm2270 = vmand %vm2142, %vm2206
    %vm2271 = vmand %vm2143, %vm2207
    %vm2272 = vmand %vm2144, %vm2208
    %vm2273 = vmand %vm2145, %vm2209
    %vm2274 = vmand %vm2146, %vm2210
    %vm2275 = vmand %vm2147, %vm2211
    %vm2276 = vmand %vm2148, %vm2212
    %vm2277 = vmand %vm2149, %vm2213
    %vm2278 = vmand %vm2150, %vm2214
    %vm2279 = vmand %vm2151, %vm2215
    %vm2280 = vmand %vm2152, %vm2216
    %vm2281 = vmand %vm2153, %vm2217
    %vm2282 = vmand %vm2154, %vm2218
    %vm2283 = vmand %vm2155, %vm2219
    %vm2284 = vmand %vm2156, %vm2220
    %vm2285 = vmand %vm2157, %vm2221
    %vm2286 = vmand %vm2158, %vm2222
    %vm2287 = vmand %vm2159, %vm2223
    %vm2288 = vmand %vm2160, %vm2224
    %vm2289 = vmand %vm2161, %vm2225
    %vm2290 = vmand %vm2162, %vm2226
    %vm2291 = vmand %vm2163, %vm2227
    %vm2292 = vmand %vm2164, %vm2228
    %vm2293 = vmand %vm2165, %vm2229
    %vm2294 = vmand %vm2166, %vm2230
    %vm2295 = vmand %vm2167, %vm2231
    %vm2296 = vmand %vm2168, %vm2232
    %vm2297 = vmand %vm2169, %vm2233
    %vm2298 = vmand %vm2170, %vm2234
    %vm2299 = vmand %vm2171, %vm2235
    %vm2300 = vmand %vm2172, %vm2236
    %vm2301 = vmand %vm2173, %vm2237
    %vm2302 = vmand %vm2174, %vm2238
    %vm2303 = vmand %vm2175, %vm2239
    %vm2304 = vmand %vm2176, %vm2240
    %vm2305 = vmand %vm2177, %vm2241
    %vm2306 = vmand %vm2178, %vm2242
    %vm2307 = vmand %vm2179, %vm2243
    %vm2308 = vmand %vm2180, %vm2244
    %vm2309 = vmand %vm2181, %vm2245
    %vm2310 = vmand %vm2182, %vm2246
    %vm2311 = vmand %vm2183, %vm2247
    %vm2312 = vmand %vm2184, %vm2248
    %vm2313 = vmand %vm2185, %vm2249
    %vm2314 = vmand %vm2186, %vm2250
    %vm2315 = vmand %vm2187, %vm2251
    %vm2316 = vmand %vm2188, %vm2252
    %vm2317 = vmand %vm2189, %vm2253
    %vm2318 = vmand %vm2190, %vm2254
    %vm2319 = vmand %vm2191, %vm2255
    %vm2320 = vmand %vm2192, %vm2256
    %vm2321 = vmand %vm2193, %vm2257
    %vm2322 = vmand %vm2194, %vm2258
    %vm2323 = vmand %vm2195, %vm2259
    %vm2324 = vmand %vm2196, %vm2260
    %v2325 = vsel %vm2261, %v1938, 0.0
    %v2326 = vsel %vm2262, %v1939, 0.0
    %v2327 = vsel %vm2263, %v1940, 0.0
    %v2328 = vsel %vm2264, %v1941, 0.0
    %v2329 = vsel %vm2265, %v1942, 0.0
    %v2330 = vsel %vm2266, %v1943, 0.0
    %v2331 = vsel %vm2267, %v1944, 0.0
    %v2332 = vsel %vm2268, %v1945, 0.0
    %v2333 = vsel %vm2269, %v1946, 0.0
    %v2334 = vsel %vm2270, %v1947, 0.0
    %v2335 = vsel %vm2271, %v1948, 0.0
    %v2336 = vsel %vm2272, %v1949, 0.0
    %v2337 = vsel %vm2273, %v1950, 0.0
    %v2338 = vsel %vm2274, %v1951, 0.0
    %v2339 = vsel %vm2275, %v1952, 0.0
    %v2340 = vsel %vm2276, %v1953, 0.0
    %v2341 = vsel %vm2277, %v1954, 0.0
    %v2342 = vsel %vm2278, %v1955, 0.0
    %v2343 = vsel %vm2279, %v1956, 0.0
    %v2344 = vsel %vm2280, %v1957, 0.0
    %v2345 = vsel %vm2281, %v1958, 0.0
    %v2346 = vsel %vm2282, %v1959, 0.0
    %v2347 = vsel %vm2283, %v1960, 0.0
    %v2348 = vsel %vm2284, %v1961, 0.0
    %v2349 = vsel %vm2285, %v1962, 0.0
    %v2350 = vsel %vm2286, %v1963, 0.0
    %v2351 = vsel %vm2287, %v1964, 0.0
    %v2352 = vsel %vm2288, %v1965, 0.0
    %v2353 = vsel %vm2289, %v1966, 0.0
    %v2354 = vsel %vm2290, %v1967, 0.0
    %v2355 = vsel %vm2291, %v1968, 0.0
    %v2356 = vsel %vm2292, %v1969, 0.0
    %v2357 = vsel %vm2293, %v1970, 0.0
    %v2358 = vsel %vm2294, %v1971, 0.0
    %v2359 = vsel %vm2295, %v1972, 0.0
    %v2360 = vsel %vm2296, %v1973, 0.0
    %v2361 = vsel %vm2297, %v1974, 0.0
    %v2362 = vsel %vm2298, %v1975, 0.0
    %v2363 = vsel %vm2299, %v1976, 0.0
    %v2364 = vsel %vm2300, %v1977, 0.0
    %v2365 = vsel %vm2301, %v1978, 0.0
    %v2366 = vsel %vm2302, %v1979, 0.0
    %v2367 = vsel %vm2303, %v1980, 0.0
    %v2368 = vsel %vm2304, %v1981, 0.0
    %v2369 = vsel %vm2305, %v1982, 0.0
    %v2370 = vsel %vm2306, %v1983, 0.0
    %v2371 = vsel %vm2307, %v1984, 0.0
    %v2372 = vsel %vm2308, %v1985, 0.0
    %v2373 = vsel %vm2309, %v1986, 0.0
    %v2374 = vsel %vm2310, %v1987, 0.0
    %v2375 = vsel %vm2311, %v1988, 0.0
    %v2376 = vsel %vm2312, %v1989, 0.0
    %v2377 = vsel %vm2313, %v1990, 0.0
    %v2378 = vsel %vm2314, %v1991, 0.0
    %v2379 = vsel %vm2315, %v1992, 0.0
    %v2380 = vsel %vm2316, %v1993, 0.0
    %v2381 = vsel %vm2317, %v1994, 0.0
    %v2382 = vsel %vm2318, %v1995, 0.0
    %v2383 = vsel %vm2319, %v1996, 0.0
    %v2384 = vsel %vm2320, %v1997, 0.0
    %v2385 = vsel %vm2321, %v1998, 0.0
    %v2386 = vsel %vm2322, %v1999, 0.0
    %v2387 = vsel %vm2323, %v2000, 0.0
    %v2388 = vsel %vm2324, %v2001, 0.0
    %vm2389 = vcmask 7168
    %v2390 = vsel %vm2389, %v2325, 0.0
    %v2391 = vsel %vm2389, %v2326, 0.0
    %v2392 = vadd.f32 %v2390, %v2391
    %v2393 = vsel %vm2389, %v2327, 0.0
    %v2394 = vadd.f32 %v2392, %v2393
    %v2395 = vsel %vm2389, %v2328, 0.0
    %v2396 = vadd.f32 %v2394, %v2395
    %v2397 = vsel %vm2389, %v2329, 0.0
    %v2398 = vadd.f32 %v2396, %v2397
    %v2399 = vsel %vm2389, %v2330, 0.0
    %v2400 = vadd.f32 %v2398, %v2399
    %v2401 = vsel %vm2389, %v2331, 0.0
    %v2402 = vadd.f32 %v2400, %v2401
    %v2403 = vsel %vm2389, %v2332, 0.0
    %v2404 = vadd.f32 %v2402, %v2403
    %v2405 = vsel %vm2389, %v2333, 0.0
    %v2406 = vadd.f32 %v2404, %v2405
    %v2407 = vsel %vm2389, %v2334, 0.0
    %v2408 = vadd.f32 %v2406, %v2407
    %v2409 = vsel %vm2389, %v2335, 0.0
    %v2410 = vadd.f32 %v2408, %v2409
    %v2411 = vsel %vm2389, %v2336, 0.0
    %v2412 = vadd.f32 %v2410, %v2411
    %v2413 = vsel %vm2389, %v2337, 0.0
    %v2414 = vadd.f32 %v2412, %v2413
    %v2415 = vsel %vm2389, %v2338, 0.0
    %v2416 = vadd.f32 %v2414, %v2415
    %v2417 = vsel %vm2389, %v2339, 0.0
    %v2418 = vadd.f32 %v2416, %v2417
    %v2419 = vsel %vm2389, %v2340, 0.0
    %v2420 = vadd.f32 %v2418, %v2419
    %v2421 = vsel %vm2389, %v2341, 0.0
    %v2422 = vadd.f32 %v2420, %v2421
    %v2423 = vsel %vm2389, %v2342, 0.0
    %v2424 = vadd.f32 %v2422, %v2423
    %v2425 = vsel %vm2389, %v2343, 0.0
    %v2426 = vadd.f32 %v2424, %v2425
    %v2427 = vsel %vm2389, %v2344, 0.0
    %v2428 = vadd.f32 %v2426, %v2427
    %v2429 = vsel %vm2389, %v2345, 0.0
    %v2430 = vadd.f32 %v2428, %v2429
    %v2431 = vsel %vm2389, %v2346, 0.0
    %v2432 = vadd.f32 %v2430, %v2431
    %v2433 = vsel %vm2389, %v2347, 0.0
    %v2434 = vadd.f32 %v2432, %v2433
    %v2435 = vsel %vm2389, %v2348, 0.0
    %v2436 = vadd.f32 %v2434, %v2435
    %v2437 = vsel %vm2389, %v2349, 0.0
    %v2438 = vadd.f32 %v2436, %v2437
    %v2439 = vsel %vm2389, %v2350, 0.0
    %v2440 = vadd.f32 %v2438, %v2439
    %v2441 = vsel %vm2389, %v2351, 0.0
    %v2442 = vadd.f32 %v2440, %v2441
    %v2443 = vsel %vm2389, %v2352, 0.0
    %v2444 = vadd.f32 %v2442, %v2443
    %v2445 = vsel %vm2389, %v2353, 0.0
    %v2446 = vadd.f32 %v2444, %v2445
    %v2447 = vsel %vm2389, %v2354, 0.0
    %v2448 = vadd.f32 %v2446, %v2447
    %v2449 = vsel %vm2389, %v2355, 0.0
    %v2450 = vadd.f32 %v2448, %v2449
    %v2451 = vsel %vm2389, %v2356, 0.0
    %v2452 = vadd.f32 %v2450, %v2451
    %v2453 = vsel %vm2389, %v2357, 0.0
    %v2454 = vadd.f32 %v2452, %v2453
    %v2455 = vsel %vm2389, %v2358, 0.0
    %v2456 = vadd.f32 %v2454, %v2455
    %v2457 = vsel %vm2389, %v2359, 0.0
    %v2458 = vadd.f32 %v2456, %v2457
    %v2459 = vsel %vm2389, %v2360, 0.0
    %v2460 = vadd.f32 %v2458, %v2459
    %v2461 = vsel %vm2389, %v2361, 0.0
    %v2462 = vadd.f32 %v2460, %v2461
    %v2463 = vsel %vm2389, %v2362, 0.0
    %v2464 = vadd.f32 %v2462, %v2463
    %v2465 = vsel %vm2389, %v2363, 0.0
    %v2466 = vadd.f32 %v2464, %v2465
    %v2467 = vsel %vm2389, %v2364, 0.0
    %v2468 = vadd.f32 %v2466, %v2467
    %v2469 = vsel %vm2389, %v2365, 0.0
    %v2470 = vadd.f32 %v2468, %v2469
    %v2471 = vsel %vm2389, %v2366, 0.0
    %v2472 = vadd.f32 %v2470, %v2471
    %v2473 = vsel %vm2389, %v2367, 0.0
    %v2474 = vadd.f32 %v2472, %v2473
    %v2475 = vsel %vm2389, %v2368, 0.0
    %v2476 = vadd.f32 %v2474, %v2475
    %v2477 = vsel %vm2389, %v2369, 0.0
    %v2478 = vadd.f32 %v2476, %v2477
    %v2479 = vsel %vm2389, %v2370, 0.0
    %v2480 = vadd.f32 %v2478, %v2479
    %v2481 = vsel %vm2389, %v2371, 0.0
    %v2482 = vadd.f32 %v2480, %v2481
    %v2483 = vsel %vm2389, %v2372, 0.0
    %v2484 = vadd.f32 %v2482, %v2483
    %v2485 = vsel %vm2389, %v2373, 0.0
    %v2486 = vadd.f32 %v2484, %v2485
    %v2487 = vsel %vm2389, %v2374, 0.0
    %v2488 = vadd.f32 %v2486, %v2487
    %v2489 = vsel %vm2389, %v2375, 0.0
    %v2490 = vadd.f32 %v2488, %v2489
    %v2491 = vsel %vm2389, %v2376, 0.0
    %v2492 = vadd.f32 %v2490, %v2491
    %v2493 = vsel %vm2389, %v2377, 0.0
    %v2494 = vadd.f32 %v2492, %v2493
    %v2495 = vsel %vm2389, %v2378, 0.0
    %v2496 = vadd.f32 %v2494, %v2495
    %v2497 = vsel %vm2389, %v2379, 0.0
    %v2498 = vadd.f32 %v2496, %v2497
    %v2499 = vsel %vm2389, %v2380, 0.0
    %v2500 = vadd.f32 %v2498, %v2499
    %v2501 = vsel %vm2389, %v2381, 0.0
    %v2502 = vadd.f32 %v2500, %v2501
    %v2503 = vsel %vm2389, %v2382, 0.0
    %v2504 = vadd.f32 %v2502, %v2503
    %v2505 = vsel %vm2389, %v2383, 0.0
    %v2506 = vadd.f32 %v2504, %v2505
    %v2507 = vsel %vm2389, %v2384, 0.0
    %v2508 = vadd.f32 %v2506, %v2507
    %v2509 = vsel %vm2389, %v2385, 0.0
    %v2510 = vadd.f32 %v2508, %v2509
    %v2511 = vsel %vm2389, %v2386, 0.0
    %v2512 = vadd.f32 %v2510, %v2511
    %v2513 = vsel %vm2389, %v2387, 0.0
    %v2514 = vadd.f32 %v2512, %v2513
    %v2515 = vsel %vm2389, %v2388, 0.0
    %v2516 = vadd.f32 %v2514, %v2515
    %2517 = vadd.xlane.f32.xlu0 %v2516
    %v2518 = vpop.xlane.xlu0 %2517
    %v2519 = vrot.slane %v2518, 4
    %v2520 = vadd.f32 %v2518, %v2519
    %v2521 = vrot.slane %v2520, 2
    %v2522 = vadd.f32 %v2520, %v2521
    %v2523 = vrot.slane %v2522, 1
    %v2524 = vadd.f32 %v2522, %v2523
    %s2525 = vtos %v2524
    %v2526 = vstv %s2525
    %v2527 = vadd.f32 %v2526, 0.0
    %2528 = vst [vmem:[#allocation2] sm:$0xff] %v2527
    // Predicated region
    $region14: #{tpu_custom_call.1} parent=1 // pred_check
      _
    $region15: #{tpu_custom_call.1} parent=1 // pred_check_branch
      %2530 = sbr.rel (0) target = $region17
    $region16: #{tpu_custom_call.1} parent=1 // pred_region
      %2532 = vsyncadd [#allocation3], 0
      %s2534 = sshll.u32 [#allocation2], 4
      %s2535 = int_to_ptr.vmem [resolvable:$true] %s2534
      %s2536 = sshll.u32 %s3, 4
      %s2537 = int_to_ptr.hbm [resolvable:$true] %s2536
      %2539 = dma.vmem_to_hbm [thread:$0]  %s2535, 128, %s2537, [#allocation3]
    $region17: #{tpu_custom_call.1} parent=1 // pred_fallthru
      _
    // Predicated region
    $region18: #{tpu_custom_call.1} parent=1 // pred_check
      _
    $region19: #{tpu_custom_call.1} parent=1 // pred_check_branch
      %2541 = sbr.rel (0) target = $region21
    $region20: #{tpu_custom_call.1} parent=1 // pred_region
      %2543 = dma.done [#allocation3], 128
    $region21: #{tpu_custom_call.1} parent=1 // pred_fallthru
      _
    %2544 = vsyncpa [#allocation3], 1

</llo_original>
